<compile_context>
chip_gen: v5e
topology: v5e:2x2
jax: 0.10.0
libtpu: 0.0.40
codegen_flags: <defaults>
</compile_context>

<pallas_src>
import functools

import jax
import jax.numpy as jnp
import numpy as np
from jax.experimental import pallas as pl
from jax.experimental.pallas import tpu as pltpu


def _round_up(x: int, m: int) -> int:
    return ((x + m - 1) // m) * m


def _stable_softplus(t):
    # softplus(t) = max(t, 0) + log(1 + exp(-|t|)); overflow-safe in f32.
    return jnp.maximum(t, 0.0) + jnp.log(1.0 + jnp.exp(-jnp.abs(t)))


def _studentt_head_kernel(x_ref, w_ref, b_ref, loc_ref, scale_ref, df_ref,
                          acc_ref, *, e_pad, min_scale, min_df):
    k = pl.program_id(1)

    @pl.when(k == 0)
    def _():
        acc_ref[...] = jnp.zeros_like(acc_ref)

    # MXU matmul, f32 accumulation resident in VMEM across the K grid axis.
    acc_ref[...] += jnp.dot(x_ref[...], w_ref[...],
                            preferred_element_type=jnp.float32)

    # Fused epilogue: bias + softplus + clamp + parameter split, once per tile.
    @pl.when(k == pl.num_programs(1) - 1)
    def _():
        y = acc_ref[...] + b_ref[...]                      # (tm, 3*e_pad), f32
        loc_ref[...] = y[:, :e_pad].astype(loc_ref.dtype)
        scale_ref[...] = jnp.maximum(
            _stable_softplus(y[:, e_pad:2 * e_pad]), min_scale
        ).astype(scale_ref.dtype)
        df_ref[...] = jnp.maximum(
            _stable_softplus(y[:, 2 * e_pad:]), min_df
        ).astype(df_ref.dtype)


def studentt_conv2d_forward(x, weight, bias, *, event_dim, min_scale=1e-6,
                            min_df=2.0, fixed_df=None, stride=(1, 1),
                            padding=(1, 1)):
    """StudentTConvNd forward (Conv2d base layer).

    x:      (N, C_in, H, W)  float32
    weight: (P*event_dim, C_in, KH, KW)  with P = 3 if fixed_df is None else 2
    bias:   (P*event_dim,)
    Returns dict {"loc", "scale", "df"}, each (N, event_dim, Ho, Wo).
    """
    n, c_in, h, w = x.shape
    c_out, _, kh, kw = weight.shape
    sh, sw = stride
    ph, pw = padding
    ho = (h + 2 * ph - kh) // sh + 1
    wo = (w + 2 * pw - kw) // sw + 1

    # ---- im2col (wrapper side; GEMM + fused epilogue run inside the kernel) --
    x_pad = jnp.pad(x, ((0, 0), (0, 0), (ph, ph), (pw, pw)))
    cols = []
    for dh in range(kh):
        for dw in range(kw):
            cols.append(x_pad[:, :, dh:dh + ho * sh:sh, dw:dw + wo * sw:sw])
    # (N, Cin, KH*KW, Ho, Wo) -> (N, Ho, Wo, Cin*KH*KW)
    patches = jnp.stack(cols, axis=2).transpose(0, 3, 4, 1, 2)
    patches = patches.reshape(n * ho * wo, c_in * kh * kw).astype(jnp.float32)

    m, k_dim = patches.shape
    e_pad = _round_up(event_dim, 128)      # lane-dense per-parameter block
    n_out = 3 * e_pad                      # [loc | scale | df] blocks

    # ---- tile sizes -----------------------------------------------------------
    tm = 256 if m >= 256 else _round_up(m, 8)
    tk = 512 if k_dim >= 512 else _round_up(k_dim, 128)
    # v7x VMEM is 64 MiB (32 MiB scoped default): shrink the K tile until the
    # double-buffered working set fits comfortably (never shrink tm or N).
    def _vmem_bytes(tm_, tk_):
        return 4 * (2 * tm_ * tk_ + 2 * tk_ * n_out + tm_ * n_out
                    + 3 * 2 * tm_ * e_pad)
    while tk > 128 and _vmem_bytes(tm, tk) > 24 * 1024 * 1024:
        tk -= 128

    m_pad = _round_up(m, tm)
    k_pad = _round_up(k_dim, tk)

    x_p = jnp.zeros((m_pad, k_pad), jnp.float32).at[:m, :k_dim].set(patches)

    # Pack the weight as (K, 3*e_pad): [loc | scale | df], each block padded to
    # a 128 multiple so every kernel store is an unmasked, lane-dense vst.
    w_flat = weight.reshape(c_out, c_in * kh * kw).T.astype(jnp.float32)
    w_p = jnp.zeros((k_pad, n_out), jnp.float32)
    b_p = jnp.zeros((1, n_out), jnp.float32)
    n_learned = 3 if fixed_df is None else 2
    for p in range(n_learned):
        w_p = w_p.at[:k_dim, p * e_pad:p * e_pad + event_dim].set(
            w_flat[:, p * event_dim:(p + 1) * event_dim])
        b_p = b_p.at[:, p * e_pad:p * e_pad + event_dim].set(
            bias[p * event_dim:(p + 1) * event_dim].astype(jnp.float32))

    grid = (m_pad // tm, k_pad // tk)
    kernel = functools.partial(_studentt_head_kernel, e_pad=e_pad,
                               min_scale=float(min_scale),
                               min_df=float(min_df))
    out_block = pl.BlockSpec((tm, e_pad), lambda i, kk: (i, 0))

    loc_f, scale_f, df_f = pl.pallas_call(
        kernel,
        out_shape=tuple(jax.ShapeDtypeStruct((m_pad, e_pad), jnp.float32)
                        for _ in range(3)),
        grid_spec=pltpu.PrefetchScalarGridSpec(
            num_scalar_prefetch=0,
            grid=grid,
            in_specs=[
                pl.BlockSpec((tm, tk), lambda i, kk: (i, kk)),     # x patches
                pl.BlockSpec((tk, n_out), lambda i, kk: (kk, 0)),  # packed W
                pl.BlockSpec((1, n_out), lambda i, kk: (0, 0)),    # packed bias
            ],
            out_specs=[out_block, out_block, out_block],
            scratch_shapes=[pltpu.VMEM((tm, n_out), jnp.float32)],
        ),
        compiler_params=pltpu.CompilerParams(
            dimension_semantics=("parallel", "arbitrary")),
    )(x_p, w_p, b_p)

    def _unflatten(a):
        a = a[:m, :event_dim].reshape(n, ho, wo, event_dim)
        return a.transpose(0, 3, 1, 2)          # -> (N, event_dim, Ho, Wo)

    loc = _unflatten(loc_f)
    scale = _unflatten(scale_f)
    if fixed_df is None:
        df = _unflatten(df_f)
    else:
        df = jnp.full_like(loc, fixed_df)
    return {"loc": loc, "scale": scale, "df": df}


if __name__ == "__main__":
    key = jax.random.PRNGKey(0)
    key_x, key_w, key_b = jax.random.split(key, 3)

    batch, c_in, height, width = 2, 4, 16, 16
    event_dim, kh, kw = 4, 3, 3
    min_scale, min_df = 1e-6, 2.0
    c_out = 3 * event_dim                      # fixed_df=None -> 3 params

    x = jax.random.normal(key_x, (batch, c_in, height, width), jnp.float32)
    weight = jax.random.normal(key_w, (c_out, c_in, kh, kw), jnp.float32) * 0.1
    bias = jax.random.normal(key_b, (c_out,), jnp.float32) * 0.1

    out = studentt_conv2d_forward(x, weight, bias, event_dim=event_dim,
                                  min_scale=min_scale, min_df=min_df,
                                  fixed_df=None, stride=(1, 1), padding=(1, 1))
    jax.block_until_ready(out)

    # Pure-JAX reference (same forward semantics as the PyTorch module).
    y = jax.lax.conv_general_dilated(
        x, weight, window_strides=(1, 1), padding=((1, 1), (1, 1)),
        dimension_numbers=("NCHW", "OIHW", "NCHW"))
    y = y + bias[None, :, None, None]
    ref_loc = y[:, :event_dim]
    ref_scale = jnp.maximum(jax.nn.softplus(y[:, event_dim:2 * event_dim]),
                            min_scale)
    ref_df = jnp.maximum(jax.nn.softplus(y[:, 2 * event_dim:]), min_df)

    np.testing.assert_allclose(out["loc"], ref_loc, atol=2e-2, rtol=2e-2)
    np.testing.assert_allclose(out["scale"], ref_scale, atol=2e-2, rtol=2e-2)
    np.testing.assert_allclose(out["df"], ref_df, atol=2e-2, rtol=2e-2)

    print("KERNEL_OK")
</pallas_src>

<mosaic_0001>
module attributes {stable_mosaic.version = 11 : i64} {
  func.func @_studentt_head_kernel(%arg0: i32, %arg1: i32, %arg2: memref<256x128xf32, #tpu.memory_space<vmem>>, %arg3: memref<128x384xf32, #tpu.memory_space<vmem>>, %arg4: memref<1x384xf32, #tpu.memory_space<vmem>>, %arg5: memref<256x128xf32, #tpu.memory_space<vmem>>, %arg6: memref<256x128xf32, #tpu.memory_space<vmem>>, %arg7: memref<256x128xf32, #tpu.memory_space<vmem>>, %arg8: memref<256x384xf32, #tpu.memory_space<vmem>>) attributes {dimension_semantics = [#tpu.dimension_semantics<parallel>, #tpu.dimension_semantics<arbitrary>], iteration_bounds = array<i64: 2, 1>, scalar_prefetch = 0 : i64, scratch_operands = 1 : i64, tpu.core_type = #tpu.core_type<tc>, window_params = [{transform_indices = @transform_0, window_bounds = array<i64: 256, 128>}, {transform_indices = @transform_1, window_bounds = array<i64: 128, 384>}, {pipeline_mode = #tpu.pipeline_mode<synchronous>, transform_indices = @transform_2, window_bounds = array<i64: 1, 384>}, {transform_indices = @transform_3, window_bounds = array<i64: 256, 128>}, {transform_indices = @transform_4, window_bounds = array<i64: 256, 128>}, {transform_indices = @transform_5, window_bounds = array<i64: 256, 128>}]} {
    %c0_i32 = arith.constant 0 : i32
    %0 = arith.cmpi eq, %arg1, %c0_i32 : i32
    %1 = arith.extui %0 : i1 to i32
    %c0_i32_0 = arith.constant 0 : i32
    %2 = arith.cmpi ne, %1, %c0_i32_0 : i32
    scf.if %2 {
      %cst_10 = arith.constant 0.000000e+00 : f32
      %12 = vector.broadcast %cst_10 : f32 to vector<256x384xf32>
      %c0_11 = arith.constant 0 : index
      %c0_12 = arith.constant 0 : index
      %13 = vector.load %arg8[%c0_11, %c0_12] : memref<256x384xf32, #tpu.memory_space<vmem>>, vector<256x384xf32>
      tpu.vector_store %arg8[%c0_11, %c0_12], %12 {strides = array<i32>} : memref<256x384xf32, #tpu.memory_space<vmem>>, vector<256x384xf32>,
    } else {
    }
    %c0 = arith.constant 0 : index
    %c0_1 = arith.constant 0 : index
    %3 = vector.load %arg8[%c0, %c0_1] : memref<256x384xf32, #tpu.memory_space<vmem>>, vector<256x384xf32>
    %c0_2 = arith.constant 0 : index
    %c0_3 = arith.constant 0 : index
    %4 = vector.load %arg2[%c0_2, %c0_3] : memref<256x128xf32, #tpu.memory_space<vmem>>, vector<256x128xf32>
    %c0_4 = arith.constant 0 : index
    %c0_5 = arith.constant 0 : index
    %5 = vector.load %arg3[%c0_4, %c0_5] : memref<128x384xf32, #tpu.memory_space<vmem>>, vector<128x384xf32>
    %cst = arith.constant dense<0.000000e+00> : vector<256x384xf32>
    %6 = tpu.matmul %4, %5, %cst {dimension_numbers = #tpu.dot_dimension_numbers<[1], [0], [0], [1], [0, 0, 1, 1], [], []>} : vector<256x128xf32>, vector<128x384xf32>, vector<256x384xf32> -> vector<256x384xf32>
    %7 = arith.addf %3, %6 : vector<256x384xf32>
    %c0_6 = arith.constant 0 : index
    %c0_7 = arith.constant 0 : index
    %8 = vector.load %arg8[%c0_6, %c0_7] : memref<256x384xf32, #tpu.memory_space<vmem>>, vector<256x384xf32>
    tpu.vector_store %arg8[%c0_6, %c0_7], %7 {strides = array<i32>} : memref<256x384xf32, #tpu.memory_space<vmem>>, vector<256x384xf32>,
    %c0_i32_8 = arith.constant 0 : i32
    %9 = arith.cmpi eq, %arg1, %c0_i32_8 : i32
    %10 = arith.extui %9 : i1 to i32
    %c0_i32_9 = arith.constant 0 : i32
    %11 = arith.cmpi ne, %10, %c0_i32_9 : i32
    scf.if %11 {
      %c0_10 = arith.constant 0 : index
      %c0_11 = arith.constant 0 : index
      %12 = vector.load %arg8[%c0_10, %c0_11] : memref<256x384xf32, #tpu.memory_space<vmem>>, vector<256x384xf32>
      %c0_12 = arith.constant 0 : index
      %c0_13 = arith.constant 0 : index
      %13 = vector.load %arg4[%c0_12, %c0_13] : memref<1x384xf32, #tpu.memory_space<vmem>>, vector<1x384xf32>
      %14 = vector.broadcast %13 : vector<1x384xf32> to vector<256x384xf32>
      %15 = arith.addf %12, %14 : vector<256x384xf32>
      %16 = vector.extract_strided_slice %15 {offsets = [0, 0], sizes = [256, 128], strides = [1, 1]} : vector<256x384xf32> to vector<256x128xf32>
      %c0_14 = arith.constant 0 : index
      %c0_15 = arith.constant 0 : index
      %17 = vector.load %arg5[%c0_14, %c0_15] : memref<256x128xf32, #tpu.memory_space<vmem>>, vector<256x128xf32>
      tpu.vector_store %arg5[%c0_14, %c0_15], %16 {strides = array<i32>} : memref<256x128xf32, #tpu.memory_space<vmem>>, vector<256x128xf32>,
      %18 = vector.extract_strided_slice %15 {offsets = [0, 128], sizes = [256, 128], strides = [1, 1]} : vector<256x384xf32> to vector<256x128xf32>
      %cst_16 = arith.constant 0.000000e+00 : f32
      %19 = vector.broadcast %cst_16 : f32 to vector<256x128xf32>
      %20 = arith.maximumf %18, %19 : vector<256x128xf32>
      %21 = math.absf %18 : vector<256x128xf32>
      %cst_17 = arith.constant 0.000000e+00 : f32
      %22 = vector.broadcast %cst_17 : f32 to vector<256x128xf32>
      %23 = arith.subf %22, %21 : vector<256x128xf32>
      %24 = math.exp %23 : vector<256x128xf32>
      %cst_18 = arith.constant 1.000000e+00 : f32
      %25 = vector.broadcast %cst_18 : f32 to vector<256x128xf32>
      %26 = arith.addf %25, %24 : vector<256x128xf32>
      %27 = math.log %26 : vector<256x128xf32>
      %28 = arith.addf %20, %27 : vector<256x128xf32>
      %cst_19 = arith.constant 9.99999997E-7 : f32
      %29 = vector.broadcast %cst_19 : f32 to vector<256x128xf32>
      %30 = arith.maximumf %28, %29 : vector<256x128xf32>
      %c0_20 = arith.constant 0 : index
      %c0_21 = arith.constant 0 : index
      %31 = vector.load %arg6[%c0_20, %c0_21] : memref<256x128xf32, #tpu.memory_space<vmem>>, vector<256x128xf32>
      tpu.vector_store %arg6[%c0_20, %c0_21], %30 {strides = array<i32>} : memref<256x128xf32, #tpu.memory_space<vmem>>, vector<256x128xf32>,
      %32 = vector.extract_strided_slice %15 {offsets = [0, 256], sizes = [256, 128], strides = [1, 1]} : vector<256x384xf32> to vector<256x128xf32>
      %cst_22 = arith.constant 0.000000e+00 : f32
      %33 = vector.broadcast %cst_22 : f32 to vector<256x128xf32>
      %34 = arith.maximumf %32, %33 : vector<256x128xf32>
      %35 = math.absf %32 : vector<256x128xf32>
      %cst_23 = arith.constant 0.000000e+00 : f32
      %36 = vector.broadcast %cst_23 : f32 to vector<256x128xf32>
      %37 = arith.subf %36, %35 : vector<256x128xf32>
      %38 = math.exp %37 : vector<256x128xf32>
      %cst_24 = arith.constant 1.000000e+00 : f32
      %39 = vector.broadcast %cst_24 : f32 to vector<256x128xf32>
      %40 = arith.addf %39, %38 : vector<256x128xf32>
      %41 = math.log %40 : vector<256x128xf32>
      %42 = arith.addf %34, %41 : vector<256x128xf32>
      %cst_25 = arith.constant 2.000000e+00 : f32
      %43 = vector.broadcast %cst_25 : f32 to vector<256x128xf32>
      %44 = arith.maximumf %42, %43 : vector<256x128xf32>
      %c0_26 = arith.constant 0 : index
      %c0_27 = arith.constant 0 : index
      %45 = vector.load %arg7[%c0_26, %c0_27] : memref<256x128xf32, #tpu.memory_space<vmem>>, vector<256x128xf32>
      tpu.vector_store %arg7[%c0_26, %c0_27], %44 {strides = array<i32>} : memref<256x128xf32, #tpu.memory_space<vmem>>, vector<256x128xf32>,
    } else {
    }
    return
  }
  func.func @transform_0(%arg0: i32, %arg1: i32) -> (i32, i32) {
    %c0_i32 = arith.constant 0 : i32
    return %arg0, %arg1 : i32, i32
  }
  func.func @transform_1(%arg0: i32, %arg1: i32) -> (i32, i32) {
    %c0_i32 = arith.constant 0 : i32
    %c0_i32_0 = arith.constant 0 : i32
    return %arg1, %c0_i32 : i32, i32
  }
  func.func @transform_2(%arg0: i32, %arg1: i32) -> (i32, i32) {
    %c0_i32 = arith.constant 0 : i32
    %c0_i32_0 = arith.constant 0 : i32
    %c0_i32_1 = arith.constant 0 : i32
    return %c0_i32, %c0_i32_0 : i32, i32
  }
  func.func @transform_3(%arg0: i32, %arg1: i32) -> (i32, i32) {
    %c0_i32 = arith.constant 0 : i32
    %c0_i32_0 = arith.constant 0 : i32
    return %arg0, %c0_i32 : i32, i32
  }
  func.func @transform_4(%arg0: i32, %arg1: i32) -> (i32, i32) {
    %c0_i32 = arith.constant 0 : i32
    %c0_i32_0 = arith.constant 0 : i32
    return %arg0, %c0_i32 : i32, i32
  }
  func.func @transform_5(%arg0: i32, %arg1: i32) -> (i32, i32) {
    %c0_i32 = arith.constant 0 : i32
    %c0_i32_0 = arith.constant 0 : i32
    return %arg0, %c0_i32 : i32, i32
  }
}

</mosaic_0001>

<llo_original>
// kernel: tpu_custom_call.1
$region0: #{tpu_custom_call.1}
  #allocation0 [shape = 'u32[]', space=smem, size = 0x4, offset = 0x4, fixed_abs, tag = 'smem constant byte address 0x4 - core index']
  #allocation1 [shape = 'u32[72,128]{1,0:T(1,128)}', space=vmem, size = 0x9000, scoped, tag = 'internal scratch']
  #allocation2 [shape = 'f32[256,384]{1,0:T(8,128)}', space=vmem, size = 0x60000, scoped, tag = 'scratch operand']
  %s0 = inlined_call_operand.hbm [shape: f32[512,128], index: 0, kind: input, shape index: {}]
  %s1 = inlined_call_operand.hbm [shape: f32[128,384], index: 1, kind: input, shape index: {}]
  %s2 = inlined_call_operand.hbm [shape: f32[1,384], index: 2, kind: input, shape index: {}]
  %s3 = inlined_call_operand.hbm [shape: f32[512,128], index: 3, kind: output, shape index: {0}]
  %s4 = inlined_call_operand.hbm [shape: f32[512,128], index: 4, kind: output, shape index: {1}]
  %s5 = inlined_call_operand.hbm [shape: f32[512,128], index: 5, kind: output, shape index: {2}]
  %6 = xla_tuple %s3, %s4, %s5
  %s7 = sld [smem:[#allocation0]]
  $region81: #{tpu_custom_call.1} parent=0
    _
  %s9 = ssub.s32 1, %s7
  %s10 = scalar_select 0, %s9, %s7
  $region1: #{tpu_custom_call.1} parent=0
    #allocation3 [shape = 'u8[262144]{0}', space=vmem, size = 0x40000, scoped, tag = 'input window, operand 0']
    #allocation4 [shape = 's32[2]{0}', space=sflag, size = 0x8, scoped, tag = 'scoped memory for tpu_custom_call.1']
    #allocation5 [shape = 's32[2]{0}', space=sflag, size = 0x8, scoped, tag = 'scoped memory for tpu_custom_call.1']
    #allocation6 [shape = 'u8[196608]{0}', space=vmem, size = 0x30000, scoped, tag = 'input window, operand 1, single buffered']
    #allocation7 [shape = 's32[1]{0}', space=sflag, size = 0x4, scoped, tag = 'scoped memory for tpu_custom_call.1']
    #allocation8 [shape = 'u8[1536]{0}', space=vmem, size = 0x800, scoped, tag = 'input window, operand 2, single buffered']
    #allocation9 [shape = 'u8[262144]{0}', space=vmem, size = 0x40000, scoped, tag = 'output window, operand 0']
    #allocation10 [shape = 'u8[262144]{0}', space=vmem, size = 0x40000, scoped, tag = 'output window, operand 1']
    #allocation11 [shape = 's32[2]{0}', space=sflag, size = 0x8, scoped, tag = 'scoped memory for tpu_custom_call.1']
    #allocation12 [shape = 'u8[262144]{0}', space=vmem, size = 0x40000, scoped, tag = 'output window, operand 2']
    %11 = vsyncpa [#allocation4], 0
    %s12 = scalar_lea.sflag [#allocation4], 1
    %13 = vsyncpa %s12, 0
    %14 = vsyncpa [#allocation7], 0
    %15 = vsyncpa [#allocation5], 0
    %s16 = scalar_lea.sflag [#allocation5], 1
    %17 = vsyncpa %s16, 0
    %18 = vsyncpa [#allocation11], 0
    %s19 = scalar_lea.sflag [#allocation11], 1
    %20 = vsyncpa %s19, 0
    loop: start=0, step=1, limit=4
    $region2: #{tpu_custom_call.1} parent=1 // loop_pre_header
      _
    $region3: #{tpu_custom_call.1} parent=1 // loop_header
      %s22 = sphi 0, %s26
      %p23 = scmp.ge.s32.totalorder %s22, 4
      %s29 = sphi 0, %s41
      %s30 = sphi 0, %s37
      %s31 = sphi 0, %s29
      %s32 = sphi 0, %s30
      %s33 = sphi 0, %s31
      %s34 = sphi 0, %s32
      %s46 = sphi 0, %s48
      %s49 = sphi 0, %s46
      %s50 = sphi 0, %s49
      %s66 = sphi 0, %s50
      %s72 = sphi 0, %s74
      %s75 = sphi 0, %s72
      %s76 = sphi 0, %s75
      %s92 = sphi 0, %s76
      %s96 = sphi 0, %s96
      %s98 = sphi 0, %s96
      %s99 = sphi 0, %s98
      %s113 = sphi 0, %s99
      %s119 = sphi 0, %s121
      %s122 = sphi 0, %s119
      %s123 = sphi 0, %s122
      %s139 = sphi 0, %s123
      %s145 = sphi 0, %s147
      %s148 = sphi 0, %s145
      %s149 = sphi 0, %s148
      %s165 = sphi 0, %s149
      %s171 = sphi 0, %s173
      %s174 = sphi 0, %s171
      %s175 = sphi 0, %s174
      %s191 = sphi 0, %s175
    $region4: #{tpu_custom_call.1} parent=1 // loop_header_branch
      %25 = sbr.rel (%p23) target = $region8
    $region5: #{tpu_custom_call.1} parent=1 // loop_body
      %s27 = ssub.s32 %s22, 1
      %s28 = ssub.s32 %s22, 2
      %s35 = sadd.s32 1, %s30
      %p36 = scmp.ge.s32.totalorder %s35, 1
      %s37 = scalar_select %p36, 0, %s35
      %s38 = sadd.s32 1, %s29
      %s39 = scalar_select %p36, %s38, %s29
      %p40 = scmp.ge.s32.totalorder %s39, 2
      %s41 = scalar_select %p40, 0, %s39
      %s42 = ssub.s32 %s29, %s41
      %s43 = ssub.s32 %s30, %s37
      %s44 = sor.u32 %s42, %s43
      %p45 = scmp.eq.s32.totalorder %s44, 0
      %s47 = sadd.s32 %s46, 1
      %s48 = scalar_select %p45, %s46, %s47
      %p51 = pneg %p45
      %p52 = scmp.eq.s32.totalorder %s22, 1
      %p53 = por %p51, %p52
      %p54 = scmp.ne.s32.totalorder %s46, %s49
      %p55 = scmp.eq.s32.totalorder %s22, 0
      %p56 = por %p54, %p55
      %p57 = scmp.ne.s32.totalorder %s46, %s49
      %p58 = scmp.eq.s32.totalorder %s27, 1
      %p59 = por %p57, %p58
      %p60 = scmp.ne.s32.totalorder %s49, %s50
      %p61 = scmp.eq.s32.totalorder %s27, 0
      %p62 = por %p60, %p61
      %p63 = scmp.ne.s32.totalorder %s49, %s50
      %p64 = scmp.eq.s32.totalorder %s28, 1
      %p65 = por %p63, %p64
      %p67 = scmp.ne.s32.totalorder %s50, %s66
      %p68 = scmp.eq.s32.totalorder %s28, 0
      %p69 = por %p67, %p68
      %s70 = ssub.s32 %s30, %s37
      %p71 = scmp.eq.s32.totalorder %s70, 0
      %s73 = sadd.s32 %s72, 1
      %s74 = scalar_select %p71, %s72, %s73
      %p77 = pneg %p71
      %p78 = scmp.eq.s32.totalorder %s22, 1
      %p79 = por %p77, %p78
      %p80 = scmp.ne.s32.totalorder %s72, %s75
      %p81 = scmp.eq.s32.totalorder %s22, 0
      %p82 = por %p80, %p81
      %p83 = scmp.ne.s32.totalorder %s72, %s75
      %p84 = scmp.eq.s32.totalorder %s27, 1
      %p85 = por %p83, %p84
      %p86 = scmp.ne.s32.totalorder %s75, %s76
      %p87 = scmp.eq.s32.totalorder %s27, 0
      %p88 = por %p86, %p87
      %p89 = scmp.ne.s32.totalorder %s75, %s76
      %p90 = scmp.eq.s32.totalorder %s28, 1
      %p91 = por %p89, %p90
      %p93 = scmp.ne.s32.totalorder %s76, %s92
      %p94 = scmp.eq.s32.totalorder %s28, 0
      %p95 = por %p93, %p94
      %s97 = sadd.s32 %s96, 1
      %p100 = scmp.eq.s32.totalorder %s22, 1
      %p101 = scmp.ne.s32.totalorder %s96, %s98
      %p102 = scmp.eq.s32.totalorder %s22, 0
      %p103 = por %p101, %p102
      %p104 = scmp.ne.s32.totalorder %s96, %s98
      %p105 = scmp.eq.s32.totalorder %s27, 1
      %p106 = por %p104, %p105
      %p107 = scmp.ne.s32.totalorder %s98, %s99
      %p108 = scmp.eq.s32.totalorder %s27, 0
      %p109 = por %p107, %p108
      %p110 = scmp.ne.s32.totalorder %s98, %s99
      %p111 = scmp.eq.s32.totalorder %s28, 1
      %p112 = por %p110, %p111
      %p114 = scmp.ne.s32.totalorder %s99, %s113
      %p115 = scmp.eq.s32.totalorder %s28, 0
      %p116 = por %p114, %p115
      %s117 = ssub.s32 %s29, %s41
      %p118 = scmp.eq.s32.totalorder %s117, 0
      %s120 = sadd.s32 %s119, 1
      %s121 = scalar_select %p118, %s119, %s120
      %p124 = pneg %p118
      %p125 = scmp.eq.s32.totalorder %s22, 1
      %p126 = por %p124, %p125
      %p127 = scmp.ne.s32.totalorder %s119, %s122
      %p128 = scmp.eq.s32.totalorder %s22, 0
      %p129 = por %p127, %p128
      %p130 = scmp.ne.s32.totalorder %s119, %s122
      %p131 = scmp.eq.s32.totalorder %s27, 1
      %p132 = por %p130, %p131
      %p133 = scmp.ne.s32.totalorder %s122, %s123
      %p134 = scmp.eq.s32.totalorder %s27, 0
      %p135 = por %p133, %p134
      %p136 = scmp.ne.s32.totalorder %s122, %s123
      %p137 = scmp.eq.s32.totalorder %s28, 1
      %p138 = por %p136, %p137
      %p140 = scmp.ne.s32.totalorder %s123, %s139
      %p141 = scmp.eq.s32.totalorder %s28, 0
      %p142 = por %p140, %p141
      %s143 = ssub.s32 %s29, %s41
      %p144 = scmp.eq.s32.totalorder %s143, 0
      %s146 = sadd.s32 %s145, 1
      %s147 = scalar_select %p144, %s145, %s146
      %p150 = pneg %p144
      %p151 = scmp.eq.s32.totalorder %s22, 1
      %p152 = por %p150, %p151
      %p153 = scmp.ne.s32.totalorder %s145, %s148
      %p154 = scmp.eq.s32.totalorder %s22, 0
      %p155 = por %p153, %p154
      %p156 = scmp.ne.s32.totalorder %s145, %s148
      %p157 = scmp.eq.s32.totalorder %s27, 1
      %p158 = por %p156, %p157
      %p159 = scmp.ne.s32.totalorder %s148, %s149
      %p160 = scmp.eq.s32.totalorder %s27, 0
      %p161 = por %p159, %p160
      %p162 = scmp.ne.s32.totalorder %s148, %s149
      %p163 = scmp.eq.s32.totalorder %s28, 1
      %p164 = por %p162, %p163
      %p166 = scmp.ne.s32.totalorder %s149, %s165
      %p167 = scmp.eq.s32.totalorder %s28, 0
      %p168 = por %p166, %p167
      %s169 = ssub.s32 %s29, %s41
      %p170 = scmp.eq.s32.totalorder %s169, 0
      %s172 = sadd.s32 %s171, 1
      %s173 = scalar_select %p170, %s171, %s172
      %p176 = pneg %p170
      %p177 = scmp.eq.s32.totalorder %s22, 1
      %p178 = por %p176, %p177
      %p179 = scmp.ne.s32.totalorder %s171, %s174
      %p180 = scmp.eq.s32.totalorder %s22, 0
      %p181 = por %p179, %p180
      %p182 = scmp.ne.s32.totalorder %s171, %s174
      %p183 = scmp.eq.s32.totalorder %s27, 1
      %p184 = por %p182, %p183
      %p185 = scmp.ne.s32.totalorder %s174, %s175
      %p186 = scmp.eq.s32.totalorder %s27, 0
      %p187 = por %p185, %p186
      %p188 = scmp.ne.s32.totalorder %s174, %s175
      %p189 = scmp.eq.s32.totalorder %s28, 1
      %p190 = por %p188, %p189
      %p192 = scmp.ne.s32.totalorder %s175, %s191
      %p193 = scmp.eq.s32.totalorder %s28, 0
      %p194 = por %p192, %p193
      %p195 = scmp.le.s32.totalorder 1, %s22
      %p196 = scmp.lt.s32.totalorder %s22, 3
      %p197 = pnand %p195, %p196
      %p198 = pneg %p197
      // Predicated region
      $region9: #{tpu_custom_call.1} parent=5 // pred_check
        _
      $region10: #{tpu_custom_call.1} parent=5 // pred_check_branch
        %200 = sbr.rel (%p197) target = $region12
      $region11: #{tpu_custom_call.1} parent=5 // pred_region
        %s201 = ssub.s32 %s22, 1
        // Predicated region
        $region13: #{tpu_custom_call.1} parent=11 // pred_check
          %p202 = pneg %p88
        $region14: #{tpu_custom_call.1} parent=11 // pred_check_branch
          %204 = sbr.rel (%p202) target = $region16
        $region15: #{tpu_custom_call.1} parent=11 // pred_region
          %s205 = smul.u32 16, %s32
          %207 = vsyncadd [#allocation7], 0
          %s208 = smul.addr %s205, 3
          %s209 = smul.addr %s208, 8
          %s210 = scalar_lea.hbm %s1, %s209
          %s211 = sshll.u32 %s210, 4
          %s212 = int_to_ptr.hbm [resolvable:$true] %s211
          %s213 = sshll.u32 [#allocation6], 4
          %s214 = int_to_ptr.vmem [resolvable:$true] %s213
          %219 = dma.hbm_to_vmem [thread:$0]  %s212, 6144, %s214, [#allocation7], 384, 384, 24
        $region16: #{tpu_custom_call.1} parent=11 // pred_fallthru
          _
        // Predicated region
        $region17: #{tpu_custom_call.1} parent=11 // pred_check
          %p220 = pneg %p109
        $region18: #{tpu_custom_call.1} parent=11 // pred_check_branch
          %222 = sbr.rel (%p220) target = $region20
        $region19: #{tpu_custom_call.1} parent=11 // pred_region
          %224 = vsyncadd [#allocation7], 0
          %s226 = sshll.u32 %s2, 4
          %s227 = int_to_ptr.hbm [resolvable:$true] %s226
          %s228 = sshll.u32 [#allocation8], 4
          %s229 = int_to_ptr.vmem [resolvable:$true] %s228
          %231 = dma.hbm_to_vmem [thread:$0]  %s227, 48, %s229, [#allocation7]
        $region20: #{tpu_custom_call.1} parent=11 // pred_fallthru
          _
      $region12: #{tpu_custom_call.1} parent=5 // pred_fallthru
        _
      %p232 = scmp.lt.s32.totalorder %s22, 2
      // Predicated region
      $region21: #{tpu_custom_call.1} parent=5 // pred_check
        %p233 = pneg %p232
      $region22: #{tpu_custom_call.1} parent=5 // pred_check_branch
        %235 = sbr.rel (%p233) target = $region24
      $region23: #{tpu_custom_call.1} parent=5 // pred_region
        // Predicated region
        $region25: #{tpu_custom_call.1} parent=23 // pred_check
          %p236 = pneg %p56
        $region26: #{tpu_custom_call.1} parent=23 // pred_check_branch
          %238 = sbr.rel (%p236) target = $region28
        $region27: #{tpu_custom_call.1} parent=23 // pred_region
          %s239 = sand.u32 %s46, 1
          %s240 = scalar_lea.sflag [#allocation4], %s239
          %s241 = sand.u32 %s46, 1
          %s242 = smul.addr %s241, 256
          %s243 = scalar_lea.vmem [#allocation3], %s242
          %s244 = smul.u32 32, %s29
          %246 = vsyncadd %s240, 0
          %s247 = sadd.s32 %s30, %s244
          %s248 = smul.addr %s247, 8
          %s249 = scalar_lea.hbm %s0, %s248
          %s250 = sshll.u32 %s249, 4
          %s251 = int_to_ptr.hbm [resolvable:$true] %s250
          %s252 = sshll.u32 %s243, 4
          %s253 = int_to_ptr.vmem [resolvable:$true] %s252
          %258 = dma.hbm_to_vmem [thread:$0]  %s251, 4096, %s253, %s240, 128, 128, 8
        $region28: #{tpu_custom_call.1} parent=23 // pred_fallthru
          _
      $region24: #{tpu_custom_call.1} parent=5 // pred_fallthru
        _
      %p259 = scmp.le.s32.totalorder 1, %s22
      %p260 = scmp.lt.s32.totalorder %s22, 3
      %p261 = pnand %p259, %p260
      %p262 = pneg %p261
      // Predicated region
      $region29: #{tpu_custom_call.1} parent=5 // pred_check
        _
      $region30: #{tpu_custom_call.1} parent=5 // pred_check_branch
        %264 = sbr.rel (%p261) target = $region32
      $region31: #{tpu_custom_call.1} parent=5 // pred_region
        %s265 = ssub.s32 %s22, 1
        %s266 = sand.u32 %s49, 1
        %s267 = scalar_lea.sflag [#allocation4], %s266
        %s268 = sand.u32 %s49, 1
        %s269 = smul.addr %s268, 256
        %s270 = scalar_lea.vmem [#allocation3], %s269
        // Predicated region
        $region33: #{tpu_custom_call.1} parent=31 // pred_check
          %p271 = pneg %p62
        $region34: #{tpu_custom_call.1} parent=31 // pred_check_branch
          %273 = sbr.rel (%p271) target = $region36
        $region35: #{tpu_custom_call.1} parent=31 // pred_region
          %275 = dma.done %s267, 4096
        $region36: #{tpu_custom_call.1} parent=31 // pred_fallthru
          _
        // Predicated region
        $region37: #{tpu_custom_call.1} parent=31 // pred_check
          %p276 = pneg %p88
        $region38: #{tpu_custom_call.1} parent=31 // pred_check_branch
          %278 = sbr.rel (%p276) target = $region40
        $region39: #{tpu_custom_call.1} parent=31 // pred_region
          %280 = dma.done [#allocation7], 6144
        $region40: #{tpu_custom_call.1} parent=31 // pred_fallthru
          _
        // Predicated region
        $region41: #{tpu_custom_call.1} parent=31 // pred_check
          %p281 = pneg %p109
        $region42: #{tpu_custom_call.1} parent=31 // pred_check_branch
          %283 = sbr.rel (%p281) target = $region44
        $region43: #{tpu_custom_call.1} parent=31 // pred_region
          %285 = dma.done [#allocation7], 48
        $region44: #{tpu_custom_call.1} parent=31 // pred_fallthru
          _
        %s286 = sand.u32 %s49, 1
        %s287 = scalar_lea.sflag [#allocation4], %s286
        %s288 = sand.u32 %s49, 1
        %s289 = smul.addr %s288, 256
        %s290 = scalar_lea.vmem [#allocation3], %s289
        %p291 = pneg %p62
        %p292 = pneg %p59
        %p293 = pneg %p88
        %p294 = pneg %p85
        %p295 = pneg %p109
        %p296 = pneg %p106
        %p297 = pneg %p135
        %p298 = pneg %p132
        %s299 = sand.u32 %s122, 1
        %s300 = scalar_lea.sflag [#allocation5], %s299
        %s301 = sand.u32 %s122, 1
        %s302 = smul.addr %s301, 256
        %s303 = scalar_lea.vmem [#allocation9], %s302
        %p304 = pneg %p161
        %p305 = pneg %p158
        %s306 = sand.u32 %s27, 1
        %s307 = scalar_lea.sflag [#allocation11], %s306
        %s308 = sand.u32 %s148, 1
        %s309 = smul.addr %s308, 256
        %s310 = scalar_lea.vmem [#allocation10], %s309
        %p311 = pneg %p187
        %p312 = pneg %p184
        %s313 = sand.u32 %s27, 1
        %s314 = scalar_lea.sflag [#allocation11], %s313
        %s315 = sand.u32 %s174, 1
        %s316 = smul.addr %s315, 256
        %s317 = scalar_lea.vmem [#allocation12], %s316
        %s318 = smul.u32 32, %s31
        %s319 = smul.u32 16, %s32
        %s320 = smul.u32 32, %s31
        %s321 = smul.u32 32, %s31
        %s322 = smul.u32 32, %s31
        %p323 = scmp.eq.s32.totalorder %s32, 0
        // Predicated region
        $region45: #{tpu_custom_call.1} parent=31 // pred_check
          %p324 = pneg %p323
        $region46: #{tpu_custom_call.1} parent=31 // pred_check_branch
          %326 = sbr.rel (%p324) target = $region48
        $region47: #{tpu_custom_call.1} parent=31 // pred_region
          %327 = vst [vmem:[#allocation2] sm:$0xff] 0.0
          %328 = vst [vmem:[#allocation2 + $0x8] sm:$0xff] 0.0
          %329 = vst [vmem:[#allocation2 + $0x10] sm:$0xff] 0.0
          %330 = vst [vmem:[#allocation2 + $0x18] sm:$0xff] 0.0
          %331 = vst [vmem:[#allocation2 + $0x20] sm:$0xff] 0.0
          %332 = vst [vmem:[#allocation2 + $0x28] sm:$0xff] 0.0
          %333 = vst [vmem:[#allocation2 + $0x30] sm:$0xff] 0.0
          %334 = vst [vmem:[#allocation2 + $0x38] sm:$0xff] 0.0
          %335 = vst [vmem:[#allocation2 + $0x40] sm:$0xff] 0.0
          %336 = vst [vmem:[#allocation2 + $0x48] sm:$0xff] 0.0
          %337 = vst [vmem:[#allocation2 + $0x50] sm:$0xff] 0.0
          %338 = vst [vmem:[#allocation2 + $0x58] sm:$0xff] 0.0
          %339 = vst [vmem:[#allocation2 + $0x60] sm:$0xff] 0.0
          %340 = vst [vmem:[#allocation2 + $0x68] sm:$0xff] 0.0
          %341 = vst [vmem:[#allocation2 + $0x70] sm:$0xff] 0.0
          %342 = vst [vmem:[#allocation2 + $0x78] sm:$0xff] 0.0
          %343 = vst [vmem:[#allocation2 + $0x80] sm:$0xff] 0.0
          %344 = vst [vmem:[#allocation2 + $0x88] sm:$0xff] 0.0
          %345 = vst [vmem:[#allocation2 + $0x90] sm:$0xff] 0.0
          %346 = vst [vmem:[#allocation2 + $0x98] sm:$0xff] 0.0
          %347 = vst [vmem:[#allocation2 + $0xa0] sm:$0xff] 0.0
          %348 = vst [vmem:[#allocation2 + $0xa8] sm:$0xff] 0.0
          %349 = vst [vmem:[#allocation2 + $0xb0] sm:$0xff] 0.0
          %350 = vst [vmem:[#allocation2 + $0xb8] sm:$0xff] 0.0
          %351 = vst [vmem:[#allocation2 + $0xc0] sm:$0xff] 0.0
          %352 = vst [vmem:[#allocation2 + $0xc8] sm:$0xff] 0.0
          %353 = vst [vmem:[#allocation2 + $0xd0] sm:$0xff] 0.0
          %354 = vst [vmem:[#allocation2 + $0xd8] sm:$0xff] 0.0
          %355 = vst [vmem:[#allocation2 + $0xe0] sm:$0xff] 0.0
          %356 = vst [vmem:[#allocation2 + $0xe8] sm:$0xff] 0.0
          %357 = vst [vmem:[#allocation2 + $0xf0] sm:$0xff] 0.0
          %358 = vst [vmem:[#allocation2 + $0xf8] sm:$0xff] 0.0
          %359 = vst [vmem:[#allocation2 + $0x100] sm:$0xff] 0.0
          %360 = vst [vmem:[#allocation2 + $0x108] sm:$0xff] 0.0
          %361 = vst [vmem:[#allocation2 + $0x110] sm:$0xff] 0.0
          %362 = vst [vmem:[#allocation2 + $0x118] sm:$0xff] 0.0
          %363 = vst [vmem:[#allocation2 + $0x120] sm:$0xff] 0.0
          %364 = vst [vmem:[#allocation2 + $0x128] sm:$0xff] 0.0
          %365 = vst [vmem:[#allocation2 + $0x130] sm:$0xff] 0.0
          %366 = vst [vmem:[#allocation2 + $0x138] sm:$0xff] 0.0
          %367 = vst [vmem:[#allocation2 + $0x140] sm:$0xff] 0.0
          %368 = vst [vmem:[#allocation2 + $0x148] sm:$0xff] 0.0
          %369 = vst [vmem:[#allocation2 + $0x150] sm:$0xff] 0.0
          %370 = vst [vmem:[#allocation2 + $0x158] sm:$0xff] 0.0
          %371 = vst [vmem:[#allocation2 + $0x160] sm:$0xff] 0.0
          %372 = vst [vmem:[#allocation2 + $0x168] sm:$0xff] 0.0
          %373 = vst [vmem:[#allocation2 + $0x170] sm:$0xff] 0.0
          %374 = vst [vmem:[#allocation2 + $0x178] sm:$0xff] 0.0
          %375 = vst [vmem:[#allocation2 + $0x180] sm:$0xff] 0.0
          %376 = vst [vmem:[#allocation2 + $0x188] sm:$0xff] 0.0
          %377 = vst [vmem:[#allocation2 + $0x190] sm:$0xff] 0.0
          %378 = vst [vmem:[#allocation2 + $0x198] sm:$0xff] 0.0
          %379 = vst [vmem:[#allocation2 + $0x1a0] sm:$0xff] 0.0
          %380 = vst [vmem:[#allocation2 + $0x1a8] sm:$0xff] 0.0
          %381 = vst [vmem:[#allocation2 + $0x1b0] sm:$0xff] 0.0
          %382 = vst [vmem:[#allocation2 + $0x1b8] sm:$0xff] 0.0
          %383 = vst [vmem:[#allocation2 + $0x1c0] sm:$0xff] 0.0
          %384 = vst [vmem:[#allocation2 + $0x1c8] sm:$0xff] 0.0
          %385 = vst [vmem:[#allocation2 + $0x1d0] sm:$0xff] 0.0
          %386 = vst [vmem:[#allocation2 + $0x1d8] sm:$0xff] 0.0
          %387 = vst [vmem:[#allocation2 + $0x1e0] sm:$0xff] 0.0
          %388 = vst [vmem:[#allocation2 + $0x1e8] sm:$0xff] 0.0
          %389 = vst [vmem:[#allocation2 + $0x1f0] sm:$0xff] 0.0
          %390 = vst [vmem:[#allocation2 + $0x1f8] sm:$0xff] 0.0
          %391 = vst [vmem:[#allocation2 + $0x200] sm:$0xff] 0.0
          %392 = vst [vmem:[#allocation2 + $0x208] sm:$0xff] 0.0
          %393 = vst [vmem:[#allocation2 + $0x210] sm:$0xff] 0.0
          %394 = vst [vmem:[#allocation2 + $0x218] sm:$0xff] 0.0
          %395 = vst [vmem:[#allocation2 + $0x220] sm:$0xff] 0.0
          %396 = vst [vmem:[#allocation2 + $0x228] sm:$0xff] 0.0
          %397 = vst [vmem:[#allocation2 + $0x230] sm:$0xff] 0.0
          %398 = vst [vmem:[#allocation2 + $0x238] sm:$0xff] 0.0
          %399 = vst [vmem:[#allocation2 + $0x240] sm:$0xff] 0.0
          %400 = vst [vmem:[#allocation2 + $0x248] sm:$0xff] 0.0
          %401 = vst [vmem:[#allocation2 + $0x250] sm:$0xff] 0.0
          %402 = vst [vmem:[#allocation2 + $0x258] sm:$0xff] 0.0
          %403 = vst [vmem:[#allocation2 + $0x260] sm:$0xff] 0.0
          %404 = vst [vmem:[#allocation2 + $0x268] sm:$0xff] 0.0
          %405 = vst [vmem:[#allocation2 + $0x270] sm:$0xff] 0.0
          %406 = vst [vmem:[#allocation2 + $0x278] sm:$0xff] 0.0
          %407 = vst [vmem:[#allocation2 + $0x280] sm:$0xff] 0.0
          %408 = vst [vmem:[#allocation2 + $0x288] sm:$0xff] 0.0
          %409 = vst [vmem:[#allocation2 + $0x290] sm:$0xff] 0.0
          %410 = vst [vmem:[#allocation2 + $0x298] sm:$0xff] 0.0
          %411 = vst [vmem:[#allocation2 + $0x2a0] sm:$0xff] 0.0
          %412 = vst [vmem:[#allocation2 + $0x2a8] sm:$0xff] 0.0
          %413 = vst [vmem:[#allocation2 + $0x2b0] sm:$0xff] 0.0
          %414 = vst [vmem:[#allocation2 + $0x2b8] sm:$0xff] 0.0
          %415 = vst [vmem:[#allocation2 + $0x2c0] sm:$0xff] 0.0
          %416 = vst [vmem:[#allocation2 + $0x2c8] sm:$0xff] 0.0
          %417 = vst [vmem:[#allocation2 + $0x2d0] sm:$0xff] 0.0
          %418 = vst [vmem:[#allocation2 + $0x2d8] sm:$0xff] 0.0
          %419 = vst [vmem:[#allocation2 + $0x2e0] sm:$0xff] 0.0
          %420 = vst [vmem:[#allocation2 + $0x2e8] sm:$0xff] 0.0
          %421 = vst [vmem:[#allocation2 + $0x2f0] sm:$0xff] 0.0
          %422 = vst [vmem:[#allocation2 + $0x2f8] sm:$0xff] 0.0
        $region48: #{tpu_custom_call.1} parent=31 // pred_fallthru
          _
        %v423 = vld [vmem:[#allocation2] sm:$0xff]
        %v424 = vld [vmem:[#allocation2 + $0x8] sm:$0xff]
        %v425 = vld [vmem:[#allocation2 + $0x10] sm:$0xff]
        %v426 = vld [vmem:[#allocation2 + $0x18] sm:$0xff]
        %v427 = vld [vmem:[#allocation2 + $0x20] sm:$0xff]
        %v428 = vld [vmem:[#allocation2 + $0x28] sm:$0xff]
        %v429 = vld [vmem:[#allocation2 + $0x30] sm:$0xff]
        %v430 = vld [vmem:[#allocation2 + $0x38] sm:$0xff]
        %v431 = vld [vmem:[#allocation2 + $0x40] sm:$0xff]
        %v432 = vld [vmem:[#allocation2 + $0x48] sm:$0xff]
        %v433 = vld [vmem:[#allocation2 + $0x50] sm:$0xff]
        %v434 = vld [vmem:[#allocation2 + $0x58] sm:$0xff]
        %v435 = vld [vmem:[#allocation2 + $0x60] sm:$0xff]
        %v436 = vld [vmem:[#allocation2 + $0x68] sm:$0xff]
        %v437 = vld [vmem:[#allocation2 + $0x70] sm:$0xff]
        %v438 = vld [vmem:[#allocation2 + $0x78] sm:$0xff]
        %v439 = vld [vmem:[#allocation2 + $0x80] sm:$0xff]
        %v440 = vld [vmem:[#allocation2 + $0x88] sm:$0xff]
        %v441 = vld [vmem:[#allocation2 + $0x90] sm:$0xff]
        %v442 = vld [vmem:[#allocation2 + $0x98] sm:$0xff]
        %v443 = vld [vmem:[#allocation2 + $0xa0] sm:$0xff]
        %v444 = vld [vmem:[#allocation2 + $0xa8] sm:$0xff]
        %v445 = vld [vmem:[#allocation2 + $0xb0] sm:$0xff]
        %v446 = vld [vmem:[#allocation2 + $0xb8] sm:$0xff]
        %v447 = vld [vmem:[#allocation2 + $0xc0] sm:$0xff]
        %v448 = vld [vmem:[#allocation2 + $0xc8] sm:$0xff]
        %v449 = vld [vmem:[#allocation2 + $0xd0] sm:$0xff]
        %v450 = vld [vmem:[#allocation2 + $0xd8] sm:$0xff]
        %v451 = vld [vmem:[#allocation2 + $0xe0] sm:$0xff]
        %v452 = vld [vmem:[#allocation2 + $0xe8] sm:$0xff]
        %v453 = vld [vmem:[#allocation2 + $0xf0] sm:$0xff]
        %v454 = vld [vmem:[#allocation2 + $0xf8] sm:$0xff]
        %v455 = vld [vmem:[#allocation2 + $0x100] sm:$0xff]
        %v456 = vld [vmem:[#allocation2 + $0x108] sm:$0xff]
        %v457 = vld [vmem:[#allocation2 + $0x110] sm:$0xff]
        %v458 = vld [vmem:[#allocation2 + $0x118] sm:$0xff]
        %v459 = vld [vmem:[#allocation2 + $0x120] sm:$0xff]
        %v460 = vld [vmem:[#allocation2 + $0x128] sm:$0xff]
        %v461 = vld [vmem:[#allocation2 + $0x130] sm:$0xff]
        %v462 = vld [vmem:[#allocation2 + $0x138] sm:$0xff]
        %v463 = vld [vmem:[#allocation2 + $0x140] sm:$0xff]
        %v464 = vld [vmem:[#allocation2 + $0x148] sm:$0xff]
        %v465 = vld [vmem:[#allocation2 + $0x150] sm:$0xff]
        %v466 = vld [vmem:[#allocation2 + $0x158] sm:$0xff]
        %v467 = vld [vmem:[#allocation2 + $0x160] sm:$0xff]
        %v468 = vld [vmem:[#allocation2 + $0x168] sm:$0xff]
        %v469 = vld [vmem:[#allocation2 + $0x170] sm:$0xff]
        %v470 = vld [vmem:[#allocation2 + $0x178] sm:$0xff]
        %v471 = vld [vmem:[#allocation2 + $0x180] sm:$0xff]
        %v472 = vld [vmem:[#allocation2 + $0x188] sm:$0xff]
        %v473 = vld [vmem:[#allocation2 + $0x190] sm:$0xff]
        %v474 = vld [vmem:[#allocation2 + $0x198] sm:$0xff]
        %v475 = vld [vmem:[#allocation2 + $0x1a0] sm:$0xff]
        %v476 = vld [vmem:[#allocation2 + $0x1a8] sm:$0xff]
        %v477 = vld [vmem:[#allocation2 + $0x1b0] sm:$0xff]
        %v478 = vld [vmem:[#allocation2 + $0x1b8] sm:$0xff]
        %v479 = vld [vmem:[#allocation2 + $0x1c0] sm:$0xff]
        %v480 = vld [vmem:[#allocation2 + $0x1c8] sm:$0xff]
        %v481 = vld [vmem:[#allocation2 + $0x1d0] sm:$0xff]
        %v482 = vld [vmem:[#allocation2 + $0x1d8] sm:$0xff]
        %v483 = vld [vmem:[#allocation2 + $0x1e0] sm:$0xff]
        %v484 = vld [vmem:[#allocation2 + $0x1e8] sm:$0xff]
        %v485 = vld [vmem:[#allocation2 + $0x1f0] sm:$0xff]
        %v486 = vld [vmem:[#allocation2 + $0x1f8] sm:$0xff]
        %v487 = vld [vmem:[#allocation2 + $0x200] sm:$0xff]
        %v488 = vld [vmem:[#allocation2 + $0x208] sm:$0xff]
        %v489 = vld [vmem:[#allocation2 + $0x210] sm:$0xff]
        %v490 = vld [vmem:[#allocation2 + $0x218] sm:$0xff]
        %v491 = vld [vmem:[#allocation2 + $0x220] sm:$0xff]
        %v492 = vld [vmem:[#allocation2 + $0x228] sm:$0xff]
        %v493 = vld [vmem:[#allocation2 + $0x230] sm:$0xff]
        %v494 = vld [vmem:[#allocation2 + $0x238] sm:$0xff]
        %v495 = vld [vmem:[#allocation2 + $0x240] sm:$0xff]
        %v496 = vld [vmem:[#allocation2 + $0x248] sm:$0xff]
        %v497 = vld [vmem:[#allocation2 + $0x250] sm:$0xff]
        %v498 = vld [vmem:[#allocation2 + $0x258] sm:$0xff]
        %v499 = vld [vmem:[#allocation2 + $0x260] sm:$0xff]
        %v500 = vld [vmem:[#allocation2 + $0x268] sm:$0xff]
        %v501 = vld [vmem:[#allocation2 + $0x270] sm:$0xff]
        %v502 = vld [vmem:[#allocation2 + $0x278] sm:$0xff]
        %v503 = vld [vmem:[#allocation2 + $0x280] sm:$0xff]
        %v504 = vld [vmem:[#allocation2 + $0x288] sm:$0xff]
        %v505 = vld [vmem:[#allocation2 + $0x290] sm:$0xff]
        %v506 = vld [vmem:[#allocation2 + $0x298] sm:$0xff]
        %v507 = vld [vmem:[#allocation2 + $0x2a0] sm:$0xff]
        %v508 = vld [vmem:[#allocation2 + $0x2a8] sm:$0xff]
        %v509 = vld [vmem:[#allocation2 + $0x2b0] sm:$0xff]
        %v510 = vld [vmem:[#allocation2 + $0x2b8] sm:$0xff]
        %v511 = vld [vmem:[#allocation2 + $0x2c0] sm:$0xff]
        %v512 = vld [vmem:[#allocation2 + $0x2c8] sm:$0xff]
        %v513 = vld [vmem:[#allocation2 + $0x2d0] sm:$0xff]
        %v514 = vld [vmem:[#allocation2 + $0x2d8] sm:$0xff]
        %v515 = vld [vmem:[#allocation2 + $0x2e0] sm:$0xff]
        %v516 = vld [vmem:[#allocation2 + $0x2e8] sm:$0xff]
        %v517 = vld [vmem:[#allocation2 + $0x2f0] sm:$0xff]
        %v518 = vld [vmem:[#allocation2 + $0x2f8] sm:$0xff]
        %v519 = vld [vmem:[%s270] sm:$0xff]
        %v520 = vld [vmem:[%s270 + $0x8] sm:$0xff]
        %v521 = vld [vmem:[%s270 + $0x10] sm:$0xff]
        %v522 = vld [vmem:[%s270 + $0x18] sm:$0xff]
        %v523 = vld [vmem:[%s270 + $0x20] sm:$0xff]
        %v524 = vld [vmem:[%s270 + $0x28] sm:$0xff]
        %v525 = vld [vmem:[%s270 + $0x30] sm:$0xff]
        %v526 = vld [vmem:[%s270 + $0x38] sm:$0xff]
        %v527 = vld [vmem:[%s270 + $0x40] sm:$0xff]
        %v528 = vld [vmem:[%s270 + $0x48] sm:$0xff]
        %v529 = vld [vmem:[%s270 + $0x50] sm:$0xff]
        %v530 = vld [vmem:[%s270 + $0x58] sm:$0xff]
        %v531 = vld [vmem:[%s270 + $0x60] sm:$0xff]
        %v532 = vld [vmem:[%s270 + $0x68] sm:$0xff]
        %v533 = vld [vmem:[%s270 + $0x70] sm:$0xff]
        %v534 = vld [vmem:[%s270 + $0x78] sm:$0xff]
        %v535 = vld [vmem:[%s270 + $0x80] sm:$0xff]
        %v536 = vld [vmem:[%s270 + $0x88] sm:$0xff]
        %v537 = vld [vmem:[%s270 + $0x90] sm:$0xff]
        %v538 = vld [vmem:[%s270 + $0x98] sm:$0xff]
        %v539 = vld [vmem:[%s270 + $0xa0] sm:$0xff]
        %v540 = vld [vmem:[%s270 + $0xa8] sm:$0xff]
        %v541 = vld [vmem:[%s270 + $0xb0] sm:$0xff]
        %v542 = vld [vmem:[%s270 + $0xb8] sm:$0xff]
        %v543 = vld [vmem:[%s270 + $0xc0] sm:$0xff]
        %v544 = vld [vmem:[%s270 + $0xc8] sm:$0xff]
        %v545 = vld [vmem:[%s270 + $0xd0] sm:$0xff]
        %v546 = vld [vmem:[%s270 + $0xd8] sm:$0xff]
        %v547 = vld [vmem:[%s270 + $0xe0] sm:$0xff]
        %v548 = vld [vmem:[%s270 + $0xe8] sm:$0xff]
        %v549 = vld [vmem:[%s270 + $0xf0] sm:$0xff]
        %v550 = vld [vmem:[%s270 + $0xf8] sm:$0xff]
        %v551 = vld [vmem:[#allocation6] sm:$0xff]
        %v552 = vld [vmem:[#allocation6 + $0x8] sm:$0xff]
        %v553 = vld [vmem:[#allocation6 + $0x10] sm:$0xff]
        %v554 = vld [vmem:[#allocation6 + $0x18] sm:$0xff]
        %v555 = vld [vmem:[#allocation6 + $0x20] sm:$0xff]
        %v556 = vld [vmem:[#allocation6 + $0x28] sm:$0xff]
        %v557 = vld [vmem:[#allocation6 + $0x30] sm:$0xff]
        %v558 = vld [vmem:[#allocation6 + $0x38] sm:$0xff]
        %v559 = vld [vmem:[#allocation6 + $0x40] sm:$0xff]
        %v560 = vld [vmem:[#allocation6 + $0x48] sm:$0xff]
        %v561 = vld [vmem:[#allocation6 + $0x50] sm:$0xff]
        %v562 = vld [vmem:[#allocation6 + $0x58] sm:$0xff]
        %v563 = vld [vmem:[#allocation6 + $0x60] sm:$0xff]
        %v564 = vld [vmem:[#allocation6 + $0x68] sm:$0xff]
        %v565 = vld [vmem:[#allocation6 + $0x70] sm:$0xff]
        %v566 = vld [vmem:[#allocation6 + $0x78] sm:$0xff]
        %v567 = vld [vmem:[#allocation6 + $0x80] sm:$0xff]
        %v568 = vld [vmem:[#allocation6 + $0x88] sm:$0xff]
        %v569 = vld [vmem:[#allocation6 + $0x90] sm:$0xff]
        %v570 = vld [vmem:[#allocation6 + $0x98] sm:$0xff]
        %v571 = vld [vmem:[#allocation6 + $0xa0] sm:$0xff]
        %v572 = vld [vmem:[#allocation6 + $0xa8] sm:$0xff]
        %v573 = vld [vmem:[#allocation6 + $0xb0] sm:$0xff]
        %v574 = vld [vmem:[#allocation6 + $0xb8] sm:$0xff]
        %v575 = vld [vmem:[#allocation6 + $0xc0] sm:$0xff]
        %v576 = vld [vmem:[#allocation6 + $0xc8] sm:$0xff]
        %v577 = vld [vmem:[#allocation6 + $0xd0] sm:$0xff]
        %v578 = vld [vmem:[#allocation6 + $0xd8] sm:$0xff]
        %v579 = vld [vmem:[#allocation6 + $0xe0] sm:$0xff]
        %v580 = vld [vmem:[#allocation6 + $0xe8] sm:$0xff]
        %v581 = vld [vmem:[#allocation6 + $0xf0] sm:$0xff]
        %v582 = vld [vmem:[#allocation6 + $0xf8] sm:$0xff]
        %v583 = vld [vmem:[#allocation6 + $0x100] sm:$0xff]
        %v584 = vld [vmem:[#allocation6 + $0x108] sm:$0xff]
        %v585 = vld [vmem:[#allocation6 + $0x110] sm:$0xff]
        %v586 = vld [vmem:[#allocation6 + $0x118] sm:$0xff]
        %v587 = vld [vmem:[#allocation6 + $0x120] sm:$0xff]
        %v588 = vld [vmem:[#allocation6 + $0x128] sm:$0xff]
        %v589 = vld [vmem:[#allocation6 + $0x130] sm:$0xff]
        %v590 = vld [vmem:[#allocation6 + $0x138] sm:$0xff]
        %v591 = vld [vmem:[#allocation6 + $0x140] sm:$0xff]
        %v592 = vld [vmem:[#allocation6 + $0x148] sm:$0xff]
        %v593 = vld [vmem:[#allocation6 + $0x150] sm:$0xff]
        %v594 = vld [vmem:[#allocation6 + $0x158] sm:$0xff]
        %v595 = vld [vmem:[#allocation6 + $0x160] sm:$0xff]
        %v596 = vld [vmem:[#allocation6 + $0x168] sm:$0xff]
        %v597 = vld [vmem:[#allocation6 + $0x170] sm:$0xff]
        %v598 = vld [vmem:[#allocation6 + $0x178] sm:$0xff]
        %599 = vmatpush.msra.mxu0 %v596
        %600 = vmatpush.msra.mxu0 %v593
        %601 = vmatpush.msra.mxu0 %v590
        %602 = vmatpush.msra.mxu0 %v587
        %603 = vmatpush.msra.mxu0 %v584
        %604 = vmatpush.msra.mxu0 %v581
        %605 = vmatpush.msra.mxu0 %v578
        %606 = vmatpush.msra.mxu0 %v575
        %607 = vmatpush.msra.mxu0 %v572
        %608 = vmatpush.msra.mxu0 %v569
        %609 = vmatpush.msra.mxu0 %v566
        %610 = vmatpush.msra.mxu0 %v563
        %611 = vmatpush.msra.mxu0 %v560
        %612 = vmatpush.msra.mxu0 %v557
        %613 = vmatpush.msra.mxu0 %v554
        %614 = vmatpush.msra.mxu0 %v551
        %615 = vmatmul.f32.gmra.mxu0 %v519
        %v616 = vpop.f32.mrf.mxu0
        %v617 = vadd.f32 0.0, %v616
        %618 = vmatmul.f32.gmra.mxu0 %v520
        %v619 = vpop.f32.mrf.mxu0
        %v620 = vadd.f32 0.0, %v619
        %621 = vmatmul.f32.gmra.mxu0 %v521
        %v622 = vpop.f32.mrf.mxu0
        %v623 = vadd.f32 0.0, %v622
        %624 = vmatmul.f32.gmra.mxu0 %v522
        %v625 = vpop.f32.mrf.mxu0
        %v626 = vadd.f32 0.0, %v625
        %627 = vmatmul.f32.gmra.mxu0 %v523
        %v628 = vpop.f32.mrf.mxu0
        %v629 = vadd.f32 0.0, %v628
        %630 = vmatmul.f32.gmra.mxu0 %v524
        %v631 = vpop.f32.mrf.mxu0
        %v632 = vadd.f32 0.0, %v631
        %633 = vmatmul.f32.gmra.mxu0 %v525
        %v634 = vpop.f32.mrf.mxu0
        %v635 = vadd.f32 0.0, %v634
        %636 = vmatmul.f32.gmra.mxu0 %v526
        %v637 = vpop.f32.mrf.mxu0
        %v638 = vadd.f32 0.0, %v637
        %639 = vmatmul.f32.gmra.mxu0 %v527
        %v640 = vpop.f32.mrf.mxu0
        %v641 = vadd.f32 0.0, %v640
        %642 = vmatmul.f32.gmra.mxu0 %v528
        %v643 = vpop.f32.mrf.mxu0
        %v644 = vadd.f32 0.0, %v643
        %645 = vmatmul.f32.gmra.mxu0 %v529
        %v646 = vpop.f32.mrf.mxu0
        %v647 = vadd.f32 0.0, %v646
        %648 = vmatmul.f32.gmra.mxu0 %v530
        %v649 = vpop.f32.mrf.mxu0
        %v650 = vadd.f32 0.0, %v649
        %651 = vmatmul.f32.gmra.mxu0 %v531
        %v652 = vpop.f32.mrf.mxu0
        %v653 = vadd.f32 0.0, %v652
        %654 = vmatmul.f32.gmra.mxu0 %v532
        %v655 = vpop.f32.mrf.mxu0
        %v656 = vadd.f32 0.0, %v655
        %657 = vmatmul.f32.gmra.mxu0 %v533
        %v658 = vpop.f32.mrf.mxu0
        %v659 = vadd.f32 0.0, %v658
        %660 = vmatmul.f32.gmra.mxu0 %v534
        %v661 = vpop.f32.mrf.mxu0
        %v662 = vadd.f32 0.0, %v661
        %663 = vmatmul.f32.gmra.mxu0 %v535
        %v664 = vpop.f32.mrf.mxu0
        %v665 = vadd.f32 0.0, %v664
        %666 = vmatmul.f32.gmra.mxu0 %v536
        %v667 = vpop.f32.mrf.mxu0
        %v668 = vadd.f32 0.0, %v667
        %669 = vmatmul.f32.gmra.mxu0 %v537
        %v670 = vpop.f32.mrf.mxu0
        %v671 = vadd.f32 0.0, %v670
        %672 = vmatmul.f32.gmra.mxu0 %v538
        %v673 = vpop.f32.mrf.mxu0
        %v674 = vadd.f32 0.0, %v673
        %675 = vmatmul.f32.gmra.mxu0 %v539
        %v676 = vpop.f32.mrf.mxu0
        %v677 = vadd.f32 0.0, %v676
        %678 = vmatmul.f32.gmra.mxu0 %v540
        %v679 = vpop.f32.mrf.mxu0
        %v680 = vadd.f32 0.0, %v679
        %681 = vmatmul.f32.gmra.mxu0 %v541
        %v682 = vpop.f32.mrf.mxu0
        %v683 = vadd.f32 0.0, %v682
        %684 = vmatmul.f32.gmra.mxu0 %v542
        %v685 = vpop.f32.mrf.mxu0
        %v686 = vadd.f32 0.0, %v685
        %687 = vmatmul.f32.gmra.mxu0 %v543
        %v688 = vpop.f32.mrf.mxu0
        %v689 = vadd.f32 0.0, %v688
        %690 = vmatmul.f32.gmra.mxu0 %v544
        %v691 = vpop.f32.mrf.mxu0
        %v692 = vadd.f32 0.0, %v691
        %693 = vmatmul.f32.gmra.mxu0 %v545
        %v694 = vpop.f32.mrf.mxu0
        %v695 = vadd.f32 0.0, %v694
        %696 = vmatmul.f32.gmra.mxu0 %v546
        %v697 = vpop.f32.mrf.mxu0
        %v698 = vadd.f32 0.0, %v697
        %699 = vmatmul.f32.gmra.mxu0 %v547
        %v700 = vpop.f32.mrf.mxu0
        %v701 = vadd.f32 0.0, %v700
        %702 = vmatmul.f32.gmra.mxu0 %v548
        %v703 = vpop.f32.mrf.mxu0
        %v704 = vadd.f32 0.0, %v703
        %705 = vmatmul.f32.gmra.mxu0 %v549
        %v706 = vpop.f32.mrf.mxu0
        %v707 = vadd.f32 0.0, %v706
        %708 = vmatmul.f32.gmra.mxu0 %v550
        %v709 = vpop.f32.mrf.mxu0
        %v710 = vadd.f32 0.0, %v709
        %711 = vdwg.mxu0
        %712 = vmatpush.msra.mxu0 %v597
        %713 = vmatpush.msra.mxu0 %v594
        %714 = vmatpush.msra.mxu0 %v591
        %715 = vmatpush.msra.mxu0 %v588
        %716 = vmatpush.msra.mxu0 %v585
        %717 = vmatpush.msra.mxu0 %v582
        %718 = vmatpush.msra.mxu0 %v579
        %719 = vmatpush.msra.mxu0 %v576
        %720 = vmatpush.msra.mxu0 %v573
        %721 = vmatpush.msra.mxu0 %v570
        %722 = vmatpush.msra.mxu0 %v567
        %723 = vmatpush.msra.mxu0 %v564
        %724 = vmatpush.msra.mxu0 %v561
        %725 = vmatpush.msra.mxu0 %v558
        %726 = vmatpush.msra.mxu0 %v555
        %727 = vmatpush.msra.mxu0 %v552
        %728 = vmatmul.f32.gmra.mxu0 %v519
        %v729 = vpop.f32.mrf.mxu0
        %v730 = vadd.f32 0.0, %v729
        %731 = vmatmul.f32.gmra.mxu0 %v520
        %v732 = vpop.f32.mrf.mxu0
        %v733 = vadd.f32 0.0, %v732
        %734 = vmatmul.f32.gmra.mxu0 %v521
        %v735 = vpop.f32.mrf.mxu0
        %v736 = vadd.f32 0.0, %v735
        %737 = vmatmul.f32.gmra.mxu0 %v522
        %v738 = vpop.f32.mrf.mxu0
        %v739 = vadd.f32 0.0, %v738
        %740 = vmatmul.f32.gmra.mxu0 %v523
        %v741 = vpop.f32.mrf.mxu0
        %v742 = vadd.f32 0.0, %v741
        %743 = vmatmul.f32.gmra.mxu0 %v524
        %v744 = vpop.f32.mrf.mxu0
        %v745 = vadd.f32 0.0, %v744
        %746 = vmatmul.f32.gmra.mxu0 %v525
        %v747 = vpop.f32.mrf.mxu0
        %v748 = vadd.f32 0.0, %v747
        %749 = vmatmul.f32.gmra.mxu0 %v526
        %v750 = vpop.f32.mrf.mxu0
        %v751 = vadd.f32 0.0, %v750
        %752 = vmatmul.f32.gmra.mxu0 %v527
        %v753 = vpop.f32.mrf.mxu0
        %v754 = vadd.f32 0.0, %v753
        %755 = vmatmul.f32.gmra.mxu0 %v528
        %v756 = vpop.f32.mrf.mxu0
        %v757 = vadd.f32 0.0, %v756
        %758 = vmatmul.f32.gmra.mxu0 %v529
        %v759 = vpop.f32.mrf.mxu0
        %v760 = vadd.f32 0.0, %v759
        %761 = vmatmul.f32.gmra.mxu0 %v530
        %v762 = vpop.f32.mrf.mxu0
        %v763 = vadd.f32 0.0, %v762
        %764 = vmatmul.f32.gmra.mxu0 %v531
        %v765 = vpop.f32.mrf.mxu0
        %v766 = vadd.f32 0.0, %v765
        %767 = vmatmul.f32.gmra.mxu0 %v532
        %v768 = vpop.f32.mrf.mxu0
        %v769 = vadd.f32 0.0, %v768
        %770 = vmatmul.f32.gmra.mxu0 %v533
        %v771 = vpop.f32.mrf.mxu0
        %v772 = vadd.f32 0.0, %v771
        %773 = vmatmul.f32.gmra.mxu0 %v534
        %v774 = vpop.f32.mrf.mxu0
        %v775 = vadd.f32 0.0, %v774
        %776 = vmatmul.f32.gmra.mxu0 %v535
        %v777 = vpop.f32.mrf.mxu0
        %v778 = vadd.f32 0.0, %v777
        %779 = vmatmul.f32.gmra.mxu0 %v536
        %v780 = vpop.f32.mrf.mxu0
        %v781 = vadd.f32 0.0, %v780
        %782 = vmatmul.f32.gmra.mxu0 %v537
        %v783 = vpop.f32.mrf.mxu0
        %v784 = vadd.f32 0.0, %v783
        %785 = vmatmul.f32.gmra.mxu0 %v538
        %v786 = vpop.f32.mrf.mxu0
        %v787 = vadd.f32 0.0, %v786
        %788 = vmatmul.f32.gmra.mxu0 %v539
        %v789 = vpop.f32.mrf.mxu0
        %v790 = vadd.f32 0.0, %v789
        %791 = vmatmul.f32.gmra.mxu0 %v540
        %v792 = vpop.f32.mrf.mxu0
        %v793 = vadd.f32 0.0, %v792
        %794 = vmatmul.f32.gmra.mxu0 %v541
        %v795 = vpop.f32.mrf.mxu0
        %v796 = vadd.f32 0.0, %v795
        %797 = vmatmul.f32.gmra.mxu0 %v542
        %v798 = vpop.f32.mrf.mxu0
        %v799 = vadd.f32 0.0, %v798
        %800 = vmatmul.f32.gmra.mxu0 %v543
        %v801 = vpop.f32.mrf.mxu0
        %v802 = vadd.f32 0.0, %v801
        %803 = vmatmul.f32.gmra.mxu0 %v544
        %v804 = vpop.f32.mrf.mxu0
        %v805 = vadd.f32 0.0, %v804
        %806 = vmatmul.f32.gmra.mxu0 %v545
        %v807 = vpop.f32.mrf.mxu0
        %v808 = vadd.f32 0.0, %v807
        %809 = vmatmul.f32.gmra.mxu0 %v546
        %v810 = vpop.f32.mrf.mxu0
        %v811 = vadd.f32 0.0, %v810
        %812 = vmatmul.f32.gmra.mxu0 %v547
        %v813 = vpop.f32.mrf.mxu0
        %v814 = vadd.f32 0.0, %v813
        %815 = vmatmul.f32.gmra.mxu0 %v548
        %v816 = vpop.f32.mrf.mxu0
        %v817 = vadd.f32 0.0, %v816
        %818 = vmatmul.f32.gmra.mxu0 %v549
        %v819 = vpop.f32.mrf.mxu0
        %v820 = vadd.f32 0.0, %v819
        %821 = vmatmul.f32.gmra.mxu0 %v550
        %v822 = vpop.f32.mrf.mxu0
        %v823 = vadd.f32 0.0, %v822
        %824 = vdwg.mxu0
        %825 = vmatpush.msra.mxu0 %v598
        %826 = vmatpush.msra.mxu0 %v595
        %827 = vmatpush.msra.mxu0 %v592
        %828 = vmatpush.msra.mxu0 %v589
        %829 = vmatpush.msra.mxu0 %v586
        %830 = vmatpush.msra.mxu0 %v583
        %831 = vmatpush.msra.mxu0 %v580
        %832 = vmatpush.msra.mxu0 %v577
        %833 = vmatpush.msra.mxu0 %v574
        %834 = vmatpush.msra.mxu0 %v571
        %835 = vmatpush.msra.mxu0 %v568
        %836 = vmatpush.msra.mxu0 %v565
        %837 = vmatpush.msra.mxu0 %v562
        %838 = vmatpush.msra.mxu0 %v559
        %839 = vmatpush.msra.mxu0 %v556
        %840 = vmatpush.msra.mxu0 %v553
        %841 = vmatmul.f32.gmra.mxu0 %v519
        %v842 = vpop.f32.mrf.mxu0
        %v843 = vadd.f32 0.0, %v842
        %844 = vmatmul.f32.gmra.mxu0 %v520
        %v845 = vpop.f32.mrf.mxu0
        %v846 = vadd.f32 0.0, %v845
        %847 = vmatmul.f32.gmra.mxu0 %v521
        %v848 = vpop.f32.mrf.mxu0
        %v849 = vadd.f32 0.0, %v848
        %850 = vmatmul.f32.gmra.mxu0 %v522
        %v851 = vpop.f32.mrf.mxu0
        %v852 = vadd.f32 0.0, %v851
        %853 = vmatmul.f32.gmra.mxu0 %v523
        %v854 = vpop.f32.mrf.mxu0
        %v855 = vadd.f32 0.0, %v854
        %856 = vmatmul.f32.gmra.mxu0 %v524
        %v857 = vpop.f32.mrf.mxu0
        %v858 = vadd.f32 0.0, %v857
        %859 = vmatmul.f32.gmra.mxu0 %v525
        %v860 = vpop.f32.mrf.mxu0
        %v861 = vadd.f32 0.0, %v860
        %862 = vmatmul.f32.gmra.mxu0 %v526
        %v863 = vpop.f32.mrf.mxu0
        %v864 = vadd.f32 0.0, %v863
        %865 = vmatmul.f32.gmra.mxu0 %v527
        %v866 = vpop.f32.mrf.mxu0
        %v867 = vadd.f32 0.0, %v866
        %868 = vmatmul.f32.gmra.mxu0 %v528
        %v869 = vpop.f32.mrf.mxu0
        %v870 = vadd.f32 0.0, %v869
        %871 = vmatmul.f32.gmra.mxu0 %v529
        %v872 = vpop.f32.mrf.mxu0
        %v873 = vadd.f32 0.0, %v872
        %874 = vmatmul.f32.gmra.mxu0 %v530
        %v875 = vpop.f32.mrf.mxu0
        %v876 = vadd.f32 0.0, %v875
        %877 = vmatmul.f32.gmra.mxu0 %v531
        %v878 = vpop.f32.mrf.mxu0
        %v879 = vadd.f32 0.0, %v878
        %880 = vmatmul.f32.gmra.mxu0 %v532
        %v881 = vpop.f32.mrf.mxu0
        %v882 = vadd.f32 0.0, %v881
        %883 = vmatmul.f32.gmra.mxu0 %v533
        %v884 = vpop.f32.mrf.mxu0
        %v885 = vadd.f32 0.0, %v884
        %886 = vmatmul.f32.gmra.mxu0 %v534
        %v887 = vpop.f32.mrf.mxu0
        %v888 = vadd.f32 0.0, %v887
        %889 = vmatmul.f32.gmra.mxu0 %v535
        %v890 = vpop.f32.mrf.mxu0
        %v891 = vadd.f32 0.0, %v890
        %892 = vmatmul.f32.gmra.mxu0 %v536
        %v893 = vpop.f32.mrf.mxu0
        %v894 = vadd.f32 0.0, %v893
        %895 = vmatmul.f32.gmra.mxu0 %v537
        %v896 = vpop.f32.mrf.mxu0
        %v897 = vadd.f32 0.0, %v896
        %898 = vmatmul.f32.gmra.mxu0 %v538
        %v899 = vpop.f32.mrf.mxu0
        %v900 = vadd.f32 0.0, %v899
        %901 = vmatmul.f32.gmra.mxu0 %v539
        %v902 = vpop.f32.mrf.mxu0
        %v903 = vadd.f32 0.0, %v902
        %904 = vmatmul.f32.gmra.mxu0 %v540
        %v905 = vpop.f32.mrf.mxu0
        %v906 = vadd.f32 0.0, %v905
        %907 = vmatmul.f32.gmra.mxu0 %v541
        %v908 = vpop.f32.mrf.mxu0
        %v909 = vadd.f32 0.0, %v908
        %910 = vmatmul.f32.gmra.mxu0 %v542
        %v911 = vpop.f32.mrf.mxu0
        %v912 = vadd.f32 0.0, %v911
        %913 = vmatmul.f32.gmra.mxu0 %v543
        %v914 = vpop.f32.mrf.mxu0
        %v915 = vadd.f32 0.0, %v914
        %916 = vmatmul.f32.gmra.mxu0 %v544
        %v917 = vpop.f32.mrf.mxu0
        %v918 = vadd.f32 0.0, %v917
        %919 = vmatmul.f32.gmra.mxu0 %v545
        %v920 = vpop.f32.mrf.mxu0
        %v921 = vadd.f32 0.0, %v920
        %922 = vmatmul.f32.gmra.mxu0 %v546
        %v923 = vpop.f32.mrf.mxu0
        %v924 = vadd.f32 0.0, %v923
        %925 = vmatmul.f32.gmra.mxu0 %v547
        %v926 = vpop.f32.mrf.mxu0
        %v927 = vadd.f32 0.0, %v926
        %928 = vmatmul.f32.gmra.mxu0 %v548
        %v929 = vpop.f32.mrf.mxu0
        %v930 = vadd.f32 0.0, %v929
        %931 = vmatmul.f32.gmra.mxu0 %v549
        %v932 = vpop.f32.mrf.mxu0
        %v933 = vadd.f32 0.0, %v932
        %934 = vmatmul.f32.gmra.mxu0 %v550
        %v935 = vpop.f32.mrf.mxu0
        %v936 = vadd.f32 0.0, %v935
        %937 = vdwg.mxu0
        %v938 = vadd.f32 %v423, %v617
        %v939 = vadd.f32 %v424, %v730
        %v940 = vadd.f32 %v425, %v843
        %v941 = vadd.f32 %v426, %v620
        %v942 = vadd.f32 %v427, %v733
        %v943 = vadd.f32 %v428, %v846
        %v944 = vadd.f32 %v429, %v623
        %v945 = vadd.f32 %v430, %v736
        %v946 = vadd.f32 %v431, %v849
        %v947 = vadd.f32 %v432, %v626
        %v948 = vadd.f32 %v433, %v739
        %v949 = vadd.f32 %v434, %v852
        %v950 = vadd.f32 %v435, %v629
        %v951 = vadd.f32 %v436, %v742
        %v952 = vadd.f32 %v437, %v855
        %v953 = vadd.f32 %v438, %v632
        %v954 = vadd.f32 %v439, %v745
        %v955 = vadd.f32 %v440, %v858
        %v956 = vadd.f32 %v441, %v635
        %v957 = vadd.f32 %v442, %v748
        %v958 = vadd.f32 %v443, %v861
        %v959 = vadd.f32 %v444, %v638
        %v960 = vadd.f32 %v445, %v751
        %v961 = vadd.f32 %v446, %v864
        %v962 = vadd.f32 %v447, %v641
        %v963 = vadd.f32 %v448, %v754
        %v964 = vadd.f32 %v449, %v867
        %v965 = vadd.f32 %v450, %v644
        %v966 = vadd.f32 %v451, %v757
        %v967 = vadd.f32 %v452, %v870
        %v968 = vadd.f32 %v453, %v647
        %v969 = vadd.f32 %v454, %v760
        %v970 = vadd.f32 %v455, %v873
        %v971 = vadd.f32 %v456, %v650
        %v972 = vadd.f32 %v457, %v763
        %v973 = vadd.f32 %v458, %v876
        %v974 = vadd.f32 %v459, %v653
        %v975 = vadd.f32 %v460, %v766
        %v976 = vadd.f32 %v461, %v879
        %v977 = vadd.f32 %v462, %v656
        %v978 = vadd.f32 %v463, %v769
        %v979 = vadd.f32 %v464, %v882
        %v980 = vadd.f32 %v465, %v659
        %v981 = vadd.f32 %v466, %v772
        %v982 = vadd.f32 %v467, %v885
        %v983 = vadd.f32 %v468, %v662
        %v984 = vadd.f32 %v469, %v775
        %v985 = vadd.f32 %v470, %v888
        %v986 = vadd.f32 %v471, %v665
        %v987 = vadd.f32 %v472, %v778
        %v988 = vadd.f32 %v473, %v891
        %v989 = vadd.f32 %v474, %v668
        %v990 = vadd.f32 %v475, %v781
        %v991 = vadd.f32 %v476, %v894
        %v992 = vadd.f32 %v477, %v671
        %v993 = vadd.f32 %v478, %v784
        %v994 = vadd.f32 %v479, %v897
        %v995 = vadd.f32 %v480, %v674
        %v996 = vadd.f32 %v481, %v787
        %v997 = vadd.f32 %v482, %v900
        %v998 = vadd.f32 %v483, %v677
        %v999 = vadd.f32 %v484, %v790
        %v1000 = vadd.f32 %v485, %v903
        %v1001 = vadd.f32 %v486, %v680
        %v1002 = vadd.f32 %v487, %v793
        %v1003 = vadd.f32 %v488, %v906
        %v1004 = vadd.f32 %v489, %v683
        %v1005 = vadd.f32 %v490, %v796
        %v1006 = vadd.f32 %v491, %v909
        %v1007 = vadd.f32 %v492, %v686
        %v1008 = vadd.f32 %v493, %v799
        %v1009 = vadd.f32 %v494, %v912
        %v1010 = vadd.f32 %v495, %v689
        %v1011 = vadd.f32 %v496, %v802
        %v1012 = vadd.f32 %v497, %v915
        %v1013 = vadd.f32 %v498, %v692
        %v1014 = vadd.f32 %v499, %v805
        %v1015 = vadd.f32 %v500, %v918
        %v1016 = vadd.f32 %v501, %v695
        %v1017 = vadd.f32 %v502, %v808
        %v1018 = vadd.f32 %v503, %v921
        %v1019 = vadd.f32 %v504, %v698
        %v1020 = vadd.f32 %v505, %v811
        %v1021 = vadd.f32 %v506, %v924
        %v1022 = vadd.f32 %v507, %v701
        %v1023 = vadd.f32 %v508, %v814
        %v1024 = vadd.f32 %v509, %v927
        %v1025 = vadd.f32 %v510, %v704
        %v1026 = vadd.f32 %v511, %v817
        %v1027 = vadd.f32 %v512, %v930
        %v1028 = vadd.f32 %v513, %v707
        %v1029 = vadd.f32 %v514, %v820
        %v1030 = vadd.f32 %v515, %v933
        %v1031 = vadd.f32 %v516, %v710
        %v1032 = vadd.f32 %v517, %v823
        %v1033 = vadd.f32 %v518, %v936
        %1034 = vst [vmem:[#allocation2] sm:$0xff] %v938
        %1035 = vst [vmem:[#allocation2 + $0x8] sm:$0xff] %v939
        %1036 = vst [vmem:[#allocation2 + $0x10] sm:$0xff] %v940
        %1037 = vst [vmem:[#allocation2 + $0x18] sm:$0xff] %v941
        %1038 = vst [vmem:[#allocation2 + $0x20] sm:$0xff] %v942
        %1039 = vst [vmem:[#allocation2 + $0x28] sm:$0xff] %v943
        %1040 = vst [vmem:[#allocation2 + $0x30] sm:$0xff] %v944
        %1041 = vst [vmem:[#allocation2 + $0x38] sm:$0xff] %v945
        %1042 = vst [vmem:[#allocation2 + $0x40] sm:$0xff] %v946
        %1043 = vst [vmem:[#allocation2 + $0x48] sm:$0xff] %v947
        %1044 = vst [vmem:[#allocation2 + $0x50] sm:$0xff] %v948
        %1045 = vst [vmem:[#allocation2 + $0x58] sm:$0xff] %v949
        %1046 = vst [vmem:[#allocation2 + $0x60] sm:$0xff] %v950
        %1047 = vst [vmem:[#allocation2 + $0x68] sm:$0xff] %v951
        %1048 = vst [vmem:[#allocation2 + $0x70] sm:$0xff] %v952
        %1049 = vst [vmem:[#allocation2 + $0x78] sm:$0xff] %v953
        %1050 = vst [vmem:[#allocation2 + $0x80] sm:$0xff] %v954
        %1051 = vst [vmem:[#allocation2 + $0x88] sm:$0xff] %v955
        %1052 = vst [vmem:[#allocation2 + $0x90] sm:$0xff] %v956
        %1053 = vst [vmem:[#allocation2 + $0x98] sm:$0xff] %v957
        %1054 = vst [vmem:[#allocation2 + $0xa0] sm:$0xff] %v958
        %1055 = vst [vmem:[#allocation2 + $0xa8] sm:$0xff] %v959
        %1056 = vst [vmem:[#allocation2 + $0xb0] sm:$0xff] %v960
        %1057 = vst [vmem:[#allocation2 + $0xb8] sm:$0xff] %v961
        %1058 = vst [vmem:[#allocation2 + $0xc0] sm:$0xff] %v962
        %1059 = vst [vmem:[#allocation2 + $0xc8] sm:$0xff] %v963
        %1060 = vst [vmem:[#allocation2 + $0xd0] sm:$0xff] %v964
        %1061 = vst [vmem:[#allocation2 + $0xd8] sm:$0xff] %v965
        %1062 = vst [vmem:[#allocation2 + $0xe0] sm:$0xff] %v966
        %1063 = vst [vmem:[#allocation2 + $0xe8] sm:$0xff] %v967
        %1064 = vst [vmem:[#allocation2 + $0xf0] sm:$0xff] %v968
        %1065 = vst [vmem:[#allocation2 + $0xf8] sm:$0xff] %v969
        %1066 = vst [vmem:[#allocation2 + $0x100] sm:$0xff] %v970
        %1067 = vst [vmem:[#allocation2 + $0x108] sm:$0xff] %v971
        %1068 = vst [vmem:[#allocation2 + $0x110] sm:$0xff] %v972
        %1069 = vst [vmem:[#allocation2 + $0x118] sm:$0xff] %v973
        %1070 = vst [vmem:[#allocation2 + $0x120] sm:$0xff] %v974
        %1071 = vst [vmem:[#allocation2 + $0x128] sm:$0xff] %v975
        %1072 = vst [vmem:[#allocation2 + $0x130] sm:$0xff] %v976
        %1073 = vst [vmem:[#allocation2 + $0x138] sm:$0xff] %v977
        %1074 = vst [vmem:[#allocation2 + $0x140] sm:$0xff] %v978
        %1075 = vst [vmem:[#allocation2 + $0x148] sm:$0xff] %v979
        %1076 = vst [vmem:[#allocation2 + $0x150] sm:$0xff] %v980
        %1077 = vst [vmem:[#allocation2 + $0x158] sm:$0xff] %v981
        %1078 = vst [vmem:[#allocation2 + $0x160] sm:$0xff] %v982
        %1079 = vst [vmem:[#allocation2 + $0x168] sm:$0xff] %v983
        %1080 = vst [vmem:[#allocation2 + $0x170] sm:$0xff] %v984
        %1081 = vst [vmem:[#allocation2 + $0x178] sm:$0xff] %v985
        %1082 = vst [vmem:[#allocation2 + $0x180] sm:$0xff] %v986
        %1083 = vst [vmem:[#allocation2 + $0x188] sm:$0xff] %v987
        %1084 = vst [vmem:[#allocation2 + $0x190] sm:$0xff] %v988
        %1085 = vst [vmem:[#allocation2 + $0x198] sm:$0xff] %v989
        %1086 = vst [vmem:[#allocation2 + $0x1a0] sm:$0xff] %v990
        %1087 = vst [vmem:[#allocation2 + $0x1a8] sm:$0xff] %v991
        %1088 = vst [vmem:[#allocation2 + $0x1b0] sm:$0xff] %v992
        %1089 = vst [vmem:[#allocation2 + $0x1b8] sm:$0xff] %v993
        %1090 = vst [vmem:[#allocation2 + $0x1c0] sm:$0xff] %v994
        %1091 = vst [vmem:[#allocation2 + $0x1c8] sm:$0xff] %v995
        %1092 = vst [vmem:[#allocation2 + $0x1d0] sm:$0xff] %v996
        %1093 = vst [vmem:[#allocation2 + $0x1d8] sm:$0xff] %v997
        %1094 = vst [vmem:[#allocation2 + $0x1e0] sm:$0xff] %v998
        %1095 = vst [vmem:[#allocation2 + $0x1e8] sm:$0xff] %v999
        %1096 = vst [vmem:[#allocation2 + $0x1f0] sm:$0xff] %v1000
        %1097 = vst [vmem:[#allocation2 + $0x1f8] sm:$0xff] %v1001
        %1098 = vst [vmem:[#allocation2 + $0x200] sm:$0xff] %v1002
        %1099 = vst [vmem:[#allocation2 + $0x208] sm:$0xff] %v1003
        %1100 = vst [vmem:[#allocation2 + $0x210] sm:$0xff] %v1004
        %1101 = vst [vmem:[#allocation2 + $0x218] sm:$0xff] %v1005
        %1102 = vst [vmem:[#allocation2 + $0x220] sm:$0xff] %v1006
        %1103 = vst [vmem:[#allocation2 + $0x228] sm:$0xff] %v1007
        %1104 = vst [vmem:[#allocation2 + $0x230] sm:$0xff] %v1008
        %1105 = vst [vmem:[#allocation2 + $0x238] sm:$0xff] %v1009
        %1106 = vst [vmem:[#allocation2 + $0x240] sm:$0xff] %v1010
        %1107 = vst [vmem:[#allocation2 + $0x248] sm:$0xff] %v1011
        %1108 = vst [vmem:[#allocation2 + $0x250] sm:$0xff] %v1012
        %1109 = vst [vmem:[#allocation2 + $0x258] sm:$0xff] %v1013
        %1110 = vst [vmem:[#allocation2 + $0x260] sm:$0xff] %v1014
        %1111 = vst [vmem:[#allocation2 + $0x268] sm:$0xff] %v1015
        %1112 = vst [vmem:[#allocation2 + $0x270] sm:$0xff] %v1016
        %1113 = vst [vmem:[#allocation2 + $0x278] sm:$0xff] %v1017
        %1114 = vst [vmem:[#allocation2 + $0x280] sm:$0xff] %v1018
        %1115 = vst [vmem:[#allocation2 + $0x288] sm:$0xff] %v1019
        %1116 = vst [vmem:[#allocation2 + $0x290] sm:$0xff] %v1020
        %1117 = vst [vmem:[#allocation2 + $0x298] sm:$0xff] %v1021
        %1118 = vst [vmem:[#allocation2 + $0x2a0] sm:$0xff] %v1022
        %1119 = vst [vmem:[#allocation2 + $0x2a8] sm:$0xff] %v1023
        %1120 = vst [vmem:[#allocation2 + $0x2b0] sm:$0xff] %v1024
        %1121 = vst [vmem:[#allocation2 + $0x2b8] sm:$0xff] %v1025
        %1122 = vst [vmem:[#allocation2 + $0x2c0] sm:$0xff] %v1026
        %1123 = vst [vmem:[#allocation2 + $0x2c8] sm:$0xff] %v1027
        %1124 = vst [vmem:[#allocation2 + $0x2d0] sm:$0xff] %v1028
        %1125 = vst [vmem:[#allocation2 + $0x2d8] sm:$0xff] %v1029
        %1126 = vst [vmem:[#allocation2 + $0x2e0] sm:$0xff] %v1030
        %1127 = vst [vmem:[#allocation2 + $0x2e8] sm:$0xff] %v1031
        %1128 = vst [vmem:[#allocation2 + $0x2f0] sm:$0xff] %v1032
        %1129 = vst [vmem:[#allocation2 + $0x2f8] sm:$0xff] %v1033
        // Predicated region
        $region49: #{tpu_custom_call.1} parent=31 // pred_check
          %p1130 = pneg %p323
        $region50: #{tpu_custom_call.1} parent=31 // pred_check_branch
          %1132 = sbr.rel (%p1130) target = $region52
        $region51: #{tpu_custom_call.1} parent=31 // pred_region
          %v1133 = vld [vmem:[#allocation2] sm:$0xff]
          %v1134 = vld [vmem:[#allocation2 + $0x8] sm:$0xff]
          %v1135 = vld [vmem:[#allocation2 + $0x10] sm:$0xff]
          %v1136 = vld [vmem:[#allocation2 + $0x18] sm:$0xff]
          %v1137 = vld [vmem:[#allocation2 + $0x20] sm:$0xff]
          %v1138 = vld [vmem:[#allocation2 + $0x28] sm:$0xff]
          %v1139 = vld [vmem:[#allocation2 + $0x30] sm:$0xff]
          %v1140 = vld [vmem:[#allocation2 + $0x38] sm:$0xff]
          %v1141 = vld [vmem:[#allocation2 + $0x40] sm:$0xff]
          %v1142 = vld [vmem:[#allocation2 + $0x48] sm:$0xff]
          %v1143 = vld [vmem:[#allocation2 + $0x50] sm:$0xff]
          %v1144 = vld [vmem:[#allocation2 + $0x58] sm:$0xff]
          %v1145 = vld [vmem:[#allocation2 + $0x60] sm:$0xff]
          %v1146 = vld [vmem:[#allocation2 + $0x68] sm:$0xff]
          %v1147 = vld [vmem:[#allocation2 + $0x70] sm:$0xff]
          %v1148 = vld [vmem:[#allocation2 + $0x78] sm:$0xff]
          %v1149 = vld [vmem:[#allocation2 + $0x80] sm:$0xff]
          %v1150 = vld [vmem:[#allocation2 + $0x88] sm:$0xff]
          %v1151 = vld [vmem:[#allocation2 + $0x90] sm:$0xff]
          %v1152 = vld [vmem:[#allocation2 + $0x98] sm:$0xff]
          %v1153 = vld [vmem:[#allocation2 + $0xa0] sm:$0xff]
          %v1154 = vld [vmem:[#allocation2 + $0xa8] sm:$0xff]
          %v1155 = vld [vmem:[#allocation2 + $0xb0] sm:$0xff]
          %v1156 = vld [vmem:[#allocation2 + $0xb8] sm:$0xff]
          %v1157 = vld [vmem:[#allocation2 + $0xc0] sm:$0xff]
          %v1158 = vld [vmem:[#allocation2 + $0xc8] sm:$0xff]
          %v1159 = vld [vmem:[#allocation2 + $0xd0] sm:$0xff]
          %v1160 = vld [vmem:[#allocation2 + $0xd8] sm:$0xff]
          %v1161 = vld [vmem:[#allocation2 + $0xe0] sm:$0xff]
          %v1162 = vld [vmem:[#allocation2 + $0xe8] sm:$0xff]
          %v1163 = vld [vmem:[#allocation2 + $0xf0] sm:$0xff]
          %v1164 = vld [vmem:[#allocation2 + $0xf8] sm:$0xff]
          %v1165 = vld [vmem:[#allocation2 + $0x100] sm:$0xff]
          %v1166 = vld [vmem:[#allocation2 + $0x108] sm:$0xff]
          %v1167 = vld [vmem:[#allocation2 + $0x110] sm:$0xff]
          %v1168 = vld [vmem:[#allocation2 + $0x118] sm:$0xff]
          %v1169 = vld [vmem:[#allocation2 + $0x120] sm:$0xff]
          %v1170 = vld [vmem:[#allocation2 + $0x128] sm:$0xff]
          %v1171 = vld [vmem:[#allocation2 + $0x130] sm:$0xff]
          %v1172 = vld [vmem:[#allocation2 + $0x138] sm:$0xff]
          %v1173 = vld [vmem:[#allocation2 + $0x140] sm:$0xff]
          %v1174 = vld [vmem:[#allocation2 + $0x148] sm:$0xff]
          %v1175 = vld [vmem:[#allocation2 + $0x150] sm:$0xff]
          %v1176 = vld [vmem:[#allocation2 + $0x158] sm:$0xff]
          %v1177 = vld [vmem:[#allocation2 + $0x160] sm:$0xff]
          %v1178 = vld [vmem:[#allocation2 + $0x168] sm:$0xff]
          %v1179 = vld [vmem:[#allocation2 + $0x170] sm:$0xff]
          %v1180 = vld [vmem:[#allocation2 + $0x178] sm:$0xff]
          %v1181 = vld [vmem:[#allocation2 + $0x180] sm:$0xff]
          %v1182 = vld [vmem:[#allocation2 + $0x188] sm:$0xff]
          %v1183 = vld [vmem:[#allocation2 + $0x190] sm:$0xff]
          %v1184 = vld [vmem:[#allocation2 + $0x198] sm:$0xff]
          %v1185 = vld [vmem:[#allocation2 + $0x1a0] sm:$0xff]
          %v1186 = vld [vmem:[#allocation2 + $0x1a8] sm:$0xff]
          %v1187 = vld [vmem:[#allocation2 + $0x1b0] sm:$0xff]
          %v1188 = vld [vmem:[#allocation2 + $0x1b8] sm:$0xff]
          %v1189 = vld [vmem:[#allocation2 + $0x1c0] sm:$0xff]
          %v1190 = vld [vmem:[#allocation2 + $0x1c8] sm:$0xff]
          %v1191 = vld [vmem:[#allocation2 + $0x1d0] sm:$0xff]
          %v1192 = vld [vmem:[#allocation2 + $0x1d8] sm:$0xff]
          %v1193 = vld [vmem:[#allocation2 + $0x1e0] sm:$0xff]
          %v1194 = vld [vmem:[#allocation2 + $0x1e8] sm:$0xff]
          %v1195 = vld [vmem:[#allocation2 + $0x1f0] sm:$0xff]
          %v1196 = vld [vmem:[#allocation2 + $0x1f8] sm:$0xff]
          %v1197 = vld [vmem:[#allocation2 + $0x200] sm:$0xff]
          %v1198 = vld [vmem:[#allocation2 + $0x208] sm:$0xff]
          %v1199 = vld [vmem:[#allocation2 + $0x210] sm:$0xff]
          %v1200 = vld [vmem:[#allocation2 + $0x218] sm:$0xff]
          %v1201 = vld [vmem:[#allocation2 + $0x220] sm:$0xff]
          %v1202 = vld [vmem:[#allocation2 + $0x228] sm:$0xff]
          %v1203 = vld [vmem:[#allocation2 + $0x230] sm:$0xff]
          %v1204 = vld [vmem:[#allocation2 + $0x238] sm:$0xff]
          %v1205 = vld [vmem:[#allocation2 + $0x240] sm:$0xff]
          %v1206 = vld [vmem:[#allocation2 + $0x248] sm:$0xff]
          %v1207 = vld [vmem:[#allocation2 + $0x250] sm:$0xff]
          %v1208 = vld [vmem:[#allocation2 + $0x258] sm:$0xff]
          %v1209 = vld [vmem:[#allocation2 + $0x260] sm:$0xff]
          %v1210 = vld [vmem:[#allocation2 + $0x268] sm:$0xff]
          %v1211 = vld [vmem:[#allocation2 + $0x270] sm:$0xff]
          %v1212 = vld [vmem:[#allocation2 + $0x278] sm:$0xff]
          %v1213 = vld [vmem:[#allocation2 + $0x280] sm:$0xff]
          %v1214 = vld [vmem:[#allocation2 + $0x288] sm:$0xff]
          %v1215 = vld [vmem:[#allocation2 + $0x290] sm:$0xff]
          %v1216 = vld [vmem:[#allocation2 + $0x298] sm:$0xff]
          %v1217 = vld [vmem:[#allocation2 + $0x2a0] sm:$0xff]
          %v1218 = vld [vmem:[#allocation2 + $0x2a8] sm:$0xff]
          %v1219 = vld [vmem:[#allocation2 + $0x2b0] sm:$0xff]
          %v1220 = vld [vmem:[#allocation2 + $0x2b8] sm:$0xff]
          %v1221 = vld [vmem:[#allocation2 + $0x2c0] sm:$0xff]
          %v1222 = vld [vmem:[#allocation2 + $0x2c8] sm:$0xff]
          %v1223 = vld [vmem:[#allocation2 + $0x2d0] sm:$0xff]
          %v1224 = vld [vmem:[#allocation2 + $0x2d8] sm:$0xff]
          %v1225 = vld [vmem:[#allocation2 + $0x2e0] sm:$0xff]
          %v1226 = vld [vmem:[#allocation2 + $0x2e8] sm:$0xff]
          %v1227 = vld [vmem:[#allocation2 + $0x2f0] sm:$0xff]
          %v1228 = vld [vmem:[#allocation2 + $0x2f8] sm:$0xff]
          %v1229 = vld [vmem:[#allocation8] sm:$0x7]
          %v1231 = vperm.slane %v1229, 0
          %v1232 = vperm.slane %v1229, 1
          %v1233 = vperm.slane %v1229, 2
          %v1237 = vadd.f32 %v1133, %v1231
          %v1238 = vadd.f32 %v1134, %v1232
          %v1239 = vadd.f32 %v1135, %v1233
          %v1240 = vadd.f32 %v1136, %v1231
          %v1241 = vadd.f32 %v1137, %v1232
          %v1242 = vadd.f32 %v1138, %v1233
          %v1243 = vadd.f32 %v1139, %v1231
          %v1244 = vadd.f32 %v1140, %v1232
          %v1245 = vadd.f32 %v1141, %v1233
          %v1246 = vadd.f32 %v1142, %v1231
          %v1247 = vadd.f32 %v1143, %v1232
          %v1248 = vadd.f32 %v1144, %v1233
          %v1249 = vadd.f32 %v1145, %v1231
          %v1250 = vadd.f32 %v1146, %v1232
          %v1251 = vadd.f32 %v1147, %v1233
          %v1252 = vadd.f32 %v1148, %v1231
          %v1253 = vadd.f32 %v1149, %v1232
          %v1254 = vadd.f32 %v1150, %v1233
          %v1255 = vadd.f32 %v1151, %v1231
          %v1256 = vadd.f32 %v1152, %v1232
          %v1257 = vadd.f32 %v1153, %v1233
          %v1258 = vadd.f32 %v1154, %v1231
          %v1259 = vadd.f32 %v1155, %v1232
          %v1260 = vadd.f32 %v1156, %v1233
          %v1261 = vadd.f32 %v1157, %v1231
          %v1262 = vadd.f32 %v1158, %v1232
          %v1263 = vadd.f32 %v1159, %v1233
          %v1264 = vadd.f32 %v1160, %v1231
          %v1265 = vadd.f32 %v1161, %v1232
          %v1266 = vadd.f32 %v1162, %v1233
          %v1267 = vadd.f32 %v1163, %v1231
          %v1268 = vadd.f32 %v1164, %v1232
          %v1269 = vadd.f32 %v1165, %v1233
          %v1270 = vadd.f32 %v1166, %v1231
          %v1271 = vadd.f32 %v1167, %v1232
          %v1272 = vadd.f32 %v1168, %v1233
          %v1273 = vadd.f32 %v1169, %v1231
          %v1274 = vadd.f32 %v1170, %v1232
          %v1275 = vadd.f32 %v1171, %v1233
          %v1276 = vadd.f32 %v1172, %v1231
          %v1277 = vadd.f32 %v1173, %v1232
          %v1278 = vadd.f32 %v1174, %v1233
          %v1279 = vadd.f32 %v1175, %v1231
          %v1280 = vadd.f32 %v1176, %v1232
          %v1281 = vadd.f32 %v1177, %v1233
          %v1282 = vadd.f32 %v1178, %v1231
          %v1283 = vadd.f32 %v1179, %v1232
          %v1284 = vadd.f32 %v1180, %v1233
          %v1285 = vadd.f32 %v1181, %v1231
          %v1286 = vadd.f32 %v1182, %v1232
          %v1287 = vadd.f32 %v1183, %v1233
          %v1288 = vadd.f32 %v1184, %v1231
          %v1289 = vadd.f32 %v1185, %v1232
          %v1290 = vadd.f32 %v1186, %v1233
          %v1291 = vadd.f32 %v1187, %v1231
          %v1292 = vadd.f32 %v1188, %v1232
          %v1293 = vadd.f32 %v1189, %v1233
          %v1294 = vadd.f32 %v1190, %v1231
          %v1295 = vadd.f32 %v1191, %v1232
          %v1296 = vadd.f32 %v1192, %v1233
          %v1297 = vadd.f32 %v1193, %v1231
          %v1298 = vadd.f32 %v1194, %v1232
          %v1299 = vadd.f32 %v1195, %v1233
          %v1300 = vadd.f32 %v1196, %v1231
          %v1301 = vadd.f32 %v1197, %v1232
          %v1302 = vadd.f32 %v1198, %v1233
          %v1303 = vadd.f32 %v1199, %v1231
          %v1304 = vadd.f32 %v1200, %v1232
          %v1305 = vadd.f32 %v1201, %v1233
          %v1306 = vadd.f32 %v1202, %v1231
          %v1307 = vadd.f32 %v1203, %v1232
          %v1308 = vadd.f32 %v1204, %v1233
          %v1309 = vadd.f32 %v1205, %v1231
          %v1310 = vadd.f32 %v1206, %v1232
          %v1311 = vadd.f32 %v1207, %v1233
          %v1312 = vadd.f32 %v1208, %v1231
          %v1313 = vadd.f32 %v1209, %v1232
          %v1314 = vadd.f32 %v1210, %v1233
          %v1315 = vadd.f32 %v1211, %v1231
          %v1316 = vadd.f32 %v1212, %v1232
          %v1317 = vadd.f32 %v1213, %v1233
          %v1318 = vadd.f32 %v1214, %v1231
          %v1319 = vadd.f32 %v1215, %v1232
          %v1320 = vadd.f32 %v1216, %v1233
          %v1321 = vadd.f32 %v1217, %v1231
          %v1322 = vadd.f32 %v1218, %v1232
          %v1323 = vadd.f32 %v1219, %v1233
          %v1324 = vadd.f32 %v1220, %v1231
          %v1325 = vadd.f32 %v1221, %v1232
          %v1326 = vadd.f32 %v1222, %v1233
          %v1327 = vadd.f32 %v1223, %v1231
          %v1328 = vadd.f32 %v1224, %v1232
          %v1329 = vadd.f32 %v1225, %v1233
          %v1330 = vadd.f32 %v1226, %v1231
          %v1331 = vadd.f32 %v1227, %v1232
          %v1332 = vadd.f32 %v1228, %v1233
          %1333 = vst [vmem:[%s303] sm:$0xff] %v1237
          %1334 = vst [vmem:[%s303 + $0x8] sm:$0xff] %v1240
          %1335 = vst [vmem:[%s303 + $0x10] sm:$0xff] %v1243
          %1336 = vst [vmem:[%s303 + $0x18] sm:$0xff] %v1246
          %1337 = vst [vmem:[%s303 + $0x20] sm:$0xff] %v1249
          %1338 = vst [vmem:[%s303 + $0x28] sm:$0xff] %v1252
          %1339 = vst [vmem:[%s303 + $0x30] sm:$0xff] %v1255
          %1340 = vst [vmem:[%s303 + $0x38] sm:$0xff] %v1258
          %1341 = vst [vmem:[%s303 + $0x40] sm:$0xff] %v1261
          %1342 = vst [vmem:[%s303 + $0x48] sm:$0xff] %v1264
          %1343 = vst [vmem:[%s303 + $0x50] sm:$0xff] %v1267
          %1344 = vst [vmem:[%s303 + $0x58] sm:$0xff] %v1270
          %1345 = vst [vmem:[%s303 + $0x60] sm:$0xff] %v1273
          %1346 = vst [vmem:[%s303 + $0x68] sm:$0xff] %v1276
          %1347 = vst [vmem:[%s303 + $0x70] sm:$0xff] %v1279
          %1348 = vst [vmem:[%s303 + $0x78] sm:$0xff] %v1282
          %1349 = vst [vmem:[%s303 + $0x80] sm:$0xff] %v1285
          %1350 = vst [vmem:[%s303 + $0x88] sm:$0xff] %v1288
          %1351 = vst [vmem:[%s303 + $0x90] sm:$0xff] %v1291
          %1352 = vst [vmem:[%s303 + $0x98] sm:$0xff] %v1294
          %1353 = vst [vmem:[%s303 + $0xa0] sm:$0xff] %v1297
          %1354 = vst [vmem:[%s303 + $0xa8] sm:$0xff] %v1300
          %1355 = vst [vmem:[%s303 + $0xb0] sm:$0xff] %v1303
          %1356 = vst [vmem:[%s303 + $0xb8] sm:$0xff] %v1306
          %1357 = vst [vmem:[%s303 + $0xc0] sm:$0xff] %v1309
          %1358 = vst [vmem:[%s303 + $0xc8] sm:$0xff] %v1312
          %1359 = vst [vmem:[%s303 + $0xd0] sm:$0xff] %v1315
          %1360 = vst [vmem:[%s303 + $0xd8] sm:$0xff] %v1318
          %1361 = vst [vmem:[%s303 + $0xe0] sm:$0xff] %v1321
          %1362 = vst [vmem:[%s303 + $0xe8] sm:$0xff] %v1324
          %1363 = vst [vmem:[%s303 + $0xf0] sm:$0xff] %v1327
          %1364 = vst [vmem:[%s303 + $0xf8] sm:$0xff] %v1330
          %v1365 = vmax.f32 %v1238, 0.0
          %v1366 = vmax.f32 %v1241, 0.0
          %v1367 = vmax.f32 %v1244, 0.0
          %v1368 = vmax.f32 %v1247, 0.0
          %v1369 = vmax.f32 %v1250, 0.0
          %v1370 = vmax.f32 %v1253, 0.0
          %v1371 = vmax.f32 %v1256, 0.0
          %v1372 = vmax.f32 %v1259, 0.0
          %v1373 = vmax.f32 %v1262, 0.0
          %v1374 = vmax.f32 %v1265, 0.0
          %v1375 = vmax.f32 %v1268, 0.0
          %v1376 = vmax.f32 %v1271, 0.0
          %v1377 = vmax.f32 %v1274, 0.0
          %v1378 = vmax.f32 %v1277, 0.0
          %v1379 = vmax.f32 %v1280, 0.0
          %v1380 = vmax.f32 %v1283, 0.0
          %v1381 = vmax.f32 %v1286, 0.0
          %v1382 = vmax.f32 %v1289, 0.0
          %v1383 = vmax.f32 %v1292, 0.0
          %v1384 = vmax.f32 %v1295, 0.0
          %v1385 = vmax.f32 %v1298, 0.0
          %v1386 = vmax.f32 %v1301, 0.0
          %v1387 = vmax.f32 %v1304, 0.0
          %v1388 = vmax.f32 %v1307, 0.0
          %v1389 = vmax.f32 %v1310, 0.0
          %v1390 = vmax.f32 %v1313, 0.0
          %v1391 = vmax.f32 %v1316, 0.0
          %v1392 = vmax.f32 %v1319, 0.0
          %v1393 = vmax.f32 %v1322, 0.0
          %v1394 = vmax.f32 %v1325, 0.0
          %v1395 = vmax.f32 %v1328, 0.0
          %v1396 = vmax.f32 %v1331, 0.0
          %v1397 = vand.u32 2147483647, %v1238
          %v1398 = vand.u32 2147483647, %v1241
          %v1399 = vand.u32 2147483647, %v1244
          %v1400 = vand.u32 2147483647, %v1247
          %v1401 = vand.u32 2147483647, %v1250
          %v1402 = vand.u32 2147483647, %v1253
          %v1403 = vand.u32 2147483647, %v1256
          %v1404 = vand.u32 2147483647, %v1259
          %v1405 = vand.u32 2147483647, %v1262
          %v1406 = vand.u32 2147483647, %v1265
          %v1407 = vand.u32 2147483647, %v1268
          %v1408 = vand.u32 2147483647, %v1271
          %v1409 = vand.u32 2147483647, %v1274
          %v1410 = vand.u32 2147483647, %v1277
          %v1411 = vand.u32 2147483647, %v1280
          %v1412 = vand.u32 2147483647, %v1283
          %v1413 = vand.u32 2147483647, %v1286
          %v1414 = vand.u32 2147483647, %v1289
          %v1415 = vand.u32 2147483647, %v1292
          %v1416 = vand.u32 2147483647, %v1295
          %v1417 = vand.u32 2147483647, %v1298
          %v1418 = vand.u32 2147483647, %v1301
          %v1419 = vand.u32 2147483647, %v1304
          %v1420 = vand.u32 2147483647, %v1307
          %v1421 = vand.u32 2147483647, %v1310
          %v1422 = vand.u32 2147483647, %v1313
          %v1423 = vand.u32 2147483647, %v1316
          %v1424 = vand.u32 2147483647, %v1319
          %v1425 = vand.u32 2147483647, %v1322
          %v1426 = vand.u32 2147483647, %v1325
          %v1427 = vand.u32 2147483647, %v1328
          %v1428 = vand.u32 2147483647, %v1331
          %v1429 = vsub.f32 0.0, %v1397
          %v1430 = vsub.f32 0.0, %v1398
          %v1431 = vsub.f32 0.0, %v1399
          %v1432 = vsub.f32 0.0, %v1400
          %v1433 = vsub.f32 0.0, %v1401
          %v1434 = vsub.f32 0.0, %v1402
          %v1435 = vsub.f32 0.0, %v1403
          %v1436 = vsub.f32 0.0, %v1404
          %v1437 = vsub.f32 0.0, %v1405
          %v1438 = vsub.f32 0.0, %v1406
          %v1439 = vsub.f32 0.0, %v1407
          %v1440 = vsub.f32 0.0, %v1408
          %v1441 = vsub.f32 0.0, %v1409
          %v1442 = vsub.f32 0.0, %v1410
          %v1443 = vsub.f32 0.0, %v1411
          %v1444 = vsub.f32 0.0, %v1412
          %v1445 = vsub.f32 0.0, %v1413
          %v1446 = vsub.f32 0.0, %v1414
          %v1447 = vsub.f32 0.0, %v1415
          %v1448 = vsub.f32 0.0, %v1416
          %v1449 = vsub.f32 0.0, %v1417
          %v1450 = vsub.f32 0.0, %v1418
          %v1451 = vsub.f32 0.0, %v1419
          %v1452 = vsub.f32 0.0, %v1420
          %v1453 = vsub.f32 0.0, %v1421
          %v1454 = vsub.f32 0.0, %v1422
          %v1455 = vsub.f32 0.0, %v1423
          %v1456 = vsub.f32 0.0, %v1424
          %v1457 = vsub.f32 0.0, %v1425
          %v1458 = vsub.f32 0.0, %v1426
          %v1459 = vsub.f32 0.0, %v1427
          %v1460 = vsub.f32 0.0, %v1428
          %v1461 = vmul.f32 %v1429, 1.442695
          %v1462 = vpow.pop %v1461
          %v1463 = vmul.f32 %v1430, 1.442695
          %v1464 = vpow.pop %v1463
          %v1465 = vmul.f32 %v1431, 1.442695
          %v1466 = vpow.pop %v1465
          %v1467 = vmul.f32 %v1432, 1.442695
          %v1468 = vpow.pop %v1467
          %v1469 = vmul.f32 %v1433, 1.442695
          %v1470 = vpow.pop %v1469
          %v1471 = vmul.f32 %v1434, 1.442695
          %v1472 = vpow.pop %v1471
          %v1473 = vmul.f32 %v1435, 1.442695
          %v1474 = vpow.pop %v1473
          %v1475 = vmul.f32 %v1436, 1.442695
          %v1476 = vpow.pop %v1475
          %v1477 = vmul.f32 %v1437, 1.442695
          %v1478 = vpow.pop %v1477
          %v1479 = vmul.f32 %v1438, 1.442695
          %v1480 = vpow.pop %v1479
          %v1481 = vmul.f32 %v1439, 1.442695
          %v1482 = vpow.pop %v1481
          %v1483 = vmul.f32 %v1440, 1.442695
          %v1484 = vpow.pop %v1483
          %v1485 = vmul.f32 %v1441, 1.442695
          %v1486 = vpow.pop %v1485
          %v1487 = vmul.f32 %v1442, 1.442695
          %v1488 = vpow.pop %v1487
          %v1489 = vmul.f32 %v1443, 1.442695
          %v1490 = vpow.pop %v1489
          %v1491 = vmul.f32 %v1444, 1.442695
          %v1492 = vpow.pop %v1491
          %v1493 = vmul.f32 %v1445, 1.442695
          %v1494 = vpow.pop %v1493
          %v1495 = vmul.f32 %v1446, 1.442695
          %v1496 = vpow.pop %v1495
          %v1497 = vmul.f32 %v1447, 1.442695
          %v1498 = vpow.pop %v1497
          %v1499 = vmul.f32 %v1448, 1.442695
          %v1500 = vpow.pop %v1499
          %v1501 = vmul.f32 %v1449, 1.442695
          %v1502 = vpow.pop %v1501
          %v1503 = vmul.f32 %v1450, 1.442695
          %v1504 = vpow.pop %v1503
          %v1505 = vmul.f32 %v1451, 1.442695
          %v1506 = vpow.pop %v1505
          %v1507 = vmul.f32 %v1452, 1.442695
          %v1508 = vpow.pop %v1507
          %v1509 = vmul.f32 %v1453, 1.442695
          %v1510 = vpow.pop %v1509
          %v1511 = vmul.f32 %v1454, 1.442695
          %v1512 = vpow.pop %v1511
          %v1513 = vmul.f32 %v1455, 1.442695
          %v1514 = vpow.pop %v1513
          %v1515 = vmul.f32 %v1456, 1.442695
          %v1516 = vpow.pop %v1515
          %v1517 = vmul.f32 %v1457, 1.442695
          %v1518 = vpow.pop %v1517
          %v1519 = vmul.f32 %v1458, 1.442695
          %v1520 = vpow.pop %v1519
          %v1521 = vmul.f32 %v1459, 1.442695
          %v1522 = vpow.pop %v1521
          %v1523 = vmul.f32 %v1460, 1.442695
          %v1524 = vpow.pop %v1523
          %v1525 = vadd.f32 %v1462, 1.0
          %v1526 = vadd.f32 %v1464, 1.0
          %v1527 = vadd.f32 %v1466, 1.0
          %v1528 = vadd.f32 %v1468, 1.0
          %v1529 = vadd.f32 %v1470, 1.0
          %v1530 = vadd.f32 %v1472, 1.0
          %v1531 = vadd.f32 %v1474, 1.0
          %v1532 = vadd.f32 %v1476, 1.0
          %v1533 = vadd.f32 %v1478, 1.0
          %v1534 = vadd.f32 %v1480, 1.0
          %v1535 = vadd.f32 %v1482, 1.0
          %v1536 = vadd.f32 %v1484, 1.0
          %v1537 = vadd.f32 %v1486, 1.0
          %v1538 = vadd.f32 %v1488, 1.0
          %v1539 = vadd.f32 %v1490, 1.0
          %v1540 = vadd.f32 %v1492, 1.0
          %v1541 = vadd.f32 %v1494, 1.0
          %v1542 = vadd.f32 %v1496, 1.0
          %v1543 = vadd.f32 %v1498, 1.0
          %v1544 = vadd.f32 %v1500, 1.0
          %v1545 = vadd.f32 %v1502, 1.0
          %v1546 = vadd.f32 %v1504, 1.0
          %v1547 = vadd.f32 %v1506, 1.0
          %v1548 = vadd.f32 %v1508, 1.0
          %v1549 = vadd.f32 %v1510, 1.0
          %v1550 = vadd.f32 %v1512, 1.0
          %v1551 = vadd.f32 %v1514, 1.0
          %v1552 = vadd.f32 %v1516, 1.0
          %v1553 = vadd.f32 %v1518, 1.0
          %v1554 = vadd.f32 %v1520, 1.0
          %v1555 = vadd.f32 %v1522, 1.0
          %v1556 = vadd.f32 %v1524, 1.0
          %v1557 = vlog2.pop %v1525
          %v1558 = vmul.f32 %v1557, 0.6931472
          %v1559 = vlog2.pop %v1526
          %v1560 = vmul.f32 %v1559, 0.6931472
          %v1561 = vlog2.pop %v1527
          %v1562 = vmul.f32 %v1561, 0.6931472
          %v1563 = vlog2.pop %v1528
          %v1564 = vmul.f32 %v1563, 0.6931472
          %v1565 = vlog2.pop %v1529
          %v1566 = vmul.f32 %v1565, 0.6931472
          %v1567 = vlog2.pop %v1530
          %v1568 = vmul.f32 %v1567, 0.6931472
          %v1569 = vlog2.pop %v1531
          %v1570 = vmul.f32 %v1569, 0.6931472
          %v1571 = vlog2.pop %v1532
          %v1572 = vmul.f32 %v1571, 0.6931472
          %v1573 = vlog2.pop %v1533
          %v1574 = vmul.f32 %v1573, 0.6931472
          %v1575 = vlog2.pop %v1534
          %v1576 = vmul.f32 %v1575, 0.6931472
          %v1577 = vlog2.pop %v1535
          %v1578 = vmul.f32 %v1577, 0.6931472
          %v1579 = vlog2.pop %v1536
          %v1580 = vmul.f32 %v1579, 0.6931472
          %v1581 = vlog2.pop %v1537
          %v1582 = vmul.f32 %v1581, 0.6931472
          %v1583 = vlog2.pop %v1538
          %v1584 = vmul.f32 %v1583, 0.6931472
          %v1585 = vlog2.pop %v1539
          %v1586 = vmul.f32 %v1585, 0.6931472
          %v1587 = vlog2.pop %v1540
          %v1588 = vmul.f32 %v1587, 0.6931472
          %v1589 = vlog2.pop %v1541
          %v1590 = vmul.f32 %v1589, 0.6931472
          %v1591 = vlog2.pop %v1542
          %v1592 = vmul.f32 %v1591, 0.6931472
          %v1593 = vlog2.pop %v1543
          %v1594 = vmul.f32 %v1593, 0.6931472
          %v1595 = vlog2.pop %v1544
          %v1596 = vmul.f32 %v1595, 0.6931472
          %v1597 = vlog2.pop %v1545
          %v1598 = vmul.f32 %v1597, 0.6931472
          %v1599 = vlog2.pop %v1546
          %v1600 = vmul.f32 %v1599, 0.6931472
          %v1601 = vlog2.pop %v1547
          %v1602 = vmul.f32 %v1601, 0.6931472
          %v1603 = vlog2.pop %v1548
          %v1604 = vmul.f32 %v1603, 0.6931472
          %v1605 = vlog2.pop %v1549
          %v1606 = vmul.f32 %v1605, 0.6931472
          %v1607 = vlog2.pop %v1550
          %v1608 = vmul.f32 %v1607, 0.6931472
          %v1609 = vlog2.pop %v1551
          %v1610 = vmul.f32 %v1609, 0.6931472
          %v1611 = vlog2.pop %v1552
          %v1612 = vmul.f32 %v1611, 0.6931472
          %v1613 = vlog2.pop %v1553
          %v1614 = vmul.f32 %v1613, 0.6931472
          %v1615 = vlog2.pop %v1554
          %v1616 = vmul.f32 %v1615, 0.6931472
          %v1617 = vlog2.pop %v1555
          %v1618 = vmul.f32 %v1617, 0.6931472
          %v1619 = vlog2.pop %v1556
          %v1620 = vmul.f32 %v1619, 0.6931472
          %v1621 = vadd.f32 %v1365, %v1558
          %v1622 = vadd.f32 %v1366, %v1560
          %v1623 = vadd.f32 %v1367, %v1562
          %v1624 = vadd.f32 %v1368, %v1564
          %v1625 = vadd.f32 %v1369, %v1566
          %v1626 = vadd.f32 %v1370, %v1568
          %v1627 = vadd.f32 %v1371, %v1570
          %v1628 = vadd.f32 %v1372, %v1572
          %v1629 = vadd.f32 %v1373, %v1574
          %v1630 = vadd.f32 %v1374, %v1576
          %v1631 = vadd.f32 %v1375, %v1578
          %v1632 = vadd.f32 %v1376, %v1580
          %v1633 = vadd.f32 %v1377, %v1582
          %v1634 = vadd.f32 %v1378, %v1584
          %v1635 = vadd.f32 %v1379, %v1586
          %v1636 = vadd.f32 %v1380, %v1588
          %v1637 = vadd.f32 %v1381, %v1590
          %v1638 = vadd.f32 %v1382, %v1592
          %v1639 = vadd.f32 %v1383, %v1594
          %v1640 = vadd.f32 %v1384, %v1596
          %v1641 = vadd.f32 %v1385, %v1598
          %v1642 = vadd.f32 %v1386, %v1600
          %v1643 = vadd.f32 %v1387, %v1602
          %v1644 = vadd.f32 %v1388, %v1604
          %v1645 = vadd.f32 %v1389, %v1606
          %v1646 = vadd.f32 %v1390, %v1608
          %v1647 = vadd.f32 %v1391, %v1610
          %v1648 = vadd.f32 %v1392, %v1612
          %v1649 = vadd.f32 %v1393, %v1614
          %v1650 = vadd.f32 %v1394, %v1616
          %v1651 = vadd.f32 %v1395, %v1618
          %v1652 = vadd.f32 %v1396, %v1620
          %v1653 = vmax.f32 %v1621, 1e-06
          %v1654 = vmax.f32 %v1622, 1e-06
          %v1655 = vmax.f32 %v1623, 1e-06
          %v1656 = vmax.f32 %v1624, 1e-06
          %v1657 = vmax.f32 %v1625, 1e-06
          %v1658 = vmax.f32 %v1626, 1e-06
          %v1659 = vmax.f32 %v1627, 1e-06
          %v1660 = vmax.f32 %v1628, 1e-06
          %v1661 = vmax.f32 %v1629, 1e-06
          %v1662 = vmax.f32 %v1630, 1e-06
          %v1663 = vmax.f32 %v1631, 1e-06
          %v1664 = vmax.f32 %v1632, 1e-06
          %v1665 = vmax.f32 %v1633, 1e-06
          %v1666 = vmax.f32 %v1634, 1e-06
          %v1667 = vmax.f32 %v1635, 1e-06
          %v1668 = vmax.f32 %v1636, 1e-06
          %v1669 = vmax.f32 %v1637, 1e-06
          %v1670 = vmax.f32 %v1638, 1e-06
          %v1671 = vmax.f32 %v1639, 1e-06
          %v1672 = vmax.f32 %v1640, 1e-06
          %v1673 = vmax.f32 %v1641, 1e-06
          %v1674 = vmax.f32 %v1642, 1e-06
          %v1675 = vmax.f32 %v1643, 1e-06
          %v1676 = vmax.f32 %v1644, 1e-06
          %v1677 = vmax.f32 %v1645, 1e-06
          %v1678 = vmax.f32 %v1646, 1e-06
          %v1679 = vmax.f32 %v1647, 1e-06
          %v1680 = vmax.f32 %v1648, 1e-06
          %v1681 = vmax.f32 %v1649, 1e-06
          %v1682 = vmax.f32 %v1650, 1e-06
          %v1683 = vmax.f32 %v1651, 1e-06
          %v1684 = vmax.f32 %v1652, 1e-06
          %1685 = vst [vmem:[%s310] sm:$0xff] %v1653
          %1686 = vst [vmem:[%s310 + $0x8] sm:$0xff] %v1654
          %1687 = vst [vmem:[%s310 + $0x10] sm:$0xff] %v1655
          %1688 = vst [vmem:[%s310 + $0x18] sm:$0xff] %v1656
          %1689 = vst [vmem:[%s310 + $0x20] sm:$0xff] %v1657
          %1690 = vst [vmem:[%s310 + $0x28] sm:$0xff] %v1658
          %1691 = vst [vmem:[%s310 + $0x30] sm:$0xff] %v1659
          %1692 = vst [vmem:[%s310 + $0x38] sm:$0xff] %v1660
          %1693 = vst [vmem:[%s310 + $0x40] sm:$0xff] %v1661
          %1694 = vst [vmem:[%s310 + $0x48] sm:$0xff] %v1662
          %1695 = vst [vmem:[%s310 + $0x50] sm:$0xff] %v1663
          %1696 = vst [vmem:[%s310 + $0x58] sm:$0xff] %v1664
          %1697 = vst [vmem:[%s310 + $0x60] sm:$0xff] %v1665
          %1698 = vst [vmem:[%s310 + $0x68] sm:$0xff] %v1666
          %1699 = vst [vmem:[%s310 + $0x70] sm:$0xff] %v1667
          %1700 = vst [vmem:[%s310 + $0x78] sm:$0xff] %v1668
          %1701 = vst [vmem:[%s310 + $0x80] sm:$0xff] %v1669
          %1702 = vst [vmem:[%s310 + $0x88] sm:$0xff] %v1670
          %1703 = vst [vmem:[%s310 + $0x90] sm:$0xff] %v1671
          %1704 = vst [vmem:[%s310 + $0x98] sm:$0xff] %v1672
          %1705 = vst [vmem:[%s310 + $0xa0] sm:$0xff] %v1673
          %1706 = vst [vmem:[%s310 + $0xa8] sm:$0xff] %v1674
          %1707 = vst [vmem:[%s310 + $0xb0] sm:$0xff] %v1675
          %1708 = vst [vmem:[%s310 + $0xb8] sm:$0xff] %v1676
          %1709 = vst [vmem:[%s310 + $0xc0] sm:$0xff] %v1677
          %1710 = vst [vmem:[%s310 + $0xc8] sm:$0xff] %v1678
          %1711 = vst [vmem:[%s310 + $0xd0] sm:$0xff] %v1679
          %1712 = vst [vmem:[%s310 + $0xd8] sm:$0xff] %v1680
          %1713 = vst [vmem:[%s310 + $0xe0] sm:$0xff] %v1681
          %1714 = vst [vmem:[%s310 + $0xe8] sm:$0xff] %v1682
          %1715 = vst [vmem:[%s310 + $0xf0] sm:$0xff] %v1683
          %1716 = vst [vmem:[%s310 + $0xf8] sm:$0xff] %v1684
          %v1717 = vmax.f32 %v1239, 0.0
          %v1718 = vmax.f32 %v1242, 0.0
          %v1719 = vmax.f32 %v1245, 0.0
          %v1720 = vmax.f32 %v1248, 0.0
          %v1721 = vmax.f32 %v1251, 0.0
          %v1722 = vmax.f32 %v1254, 0.0
          %v1723 = vmax.f32 %v1257, 0.0
          %v1724 = vmax.f32 %v1260, 0.0
          %v1725 = vmax.f32 %v1263, 0.0
          %v1726 = vmax.f32 %v1266, 0.0
          %v1727 = vmax.f32 %v1269, 0.0
          %v1728 = vmax.f32 %v1272, 0.0
          %v1729 = vmax.f32 %v1275, 0.0
          %v1730 = vmax.f32 %v1278, 0.0
          %v1731 = vmax.f32 %v1281, 0.0
          %v1732 = vmax.f32 %v1284, 0.0
          %v1733 = vmax.f32 %v1287, 0.0
          %v1734 = vmax.f32 %v1290, 0.0
          %v1735 = vmax.f32 %v1293, 0.0
          %v1736 = vmax.f32 %v1296, 0.0
          %v1737 = vmax.f32 %v1299, 0.0
          %v1738 = vmax.f32 %v1302, 0.0
          %v1739 = vmax.f32 %v1305, 0.0
          %v1740 = vmax.f32 %v1308, 0.0
          %v1741 = vmax.f32 %v1311, 0.0
          %v1742 = vmax.f32 %v1314, 0.0
          %v1743 = vmax.f32 %v1317, 0.0
          %v1744 = vmax.f32 %v1320, 0.0
          %v1745 = vmax.f32 %v1323, 0.0
          %v1746 = vmax.f32 %v1326, 0.0
          %v1747 = vmax.f32 %v1329, 0.0
          %v1748 = vmax.f32 %v1332, 0.0
          %v1749 = vand.u32 2147483647, %v1239
          %v1750 = vand.u32 2147483647, %v1242
          %v1751 = vand.u32 2147483647, %v1245
          %v1752 = vand.u32 2147483647, %v1248
          %v1753 = vand.u32 2147483647, %v1251
          %v1754 = vand.u32 2147483647, %v1254
          %v1755 = vand.u32 2147483647, %v1257
          %v1756 = vand.u32 2147483647, %v1260
          %v1757 = vand.u32 2147483647, %v1263
          %v1758 = vand.u32 2147483647, %v1266
          %v1759 = vand.u32 2147483647, %v1269
          %v1760 = vand.u32 2147483647, %v1272
          %v1761 = vand.u32 2147483647, %v1275
          %v1762 = vand.u32 2147483647, %v1278
          %v1763 = vand.u32 2147483647, %v1281
          %v1764 = vand.u32 2147483647, %v1284
          %v1765 = vand.u32 2147483647, %v1287
          %v1766 = vand.u32 2147483647, %v1290
          %v1767 = vand.u32 2147483647, %v1293
          %v1768 = vand.u32 2147483647, %v1296
          %v1769 = vand.u32 2147483647, %v1299
          %v1770 = vand.u32 2147483647, %v1302
          %v1771 = vand.u32 2147483647, %v1305
          %v1772 = vand.u32 2147483647, %v1308
          %v1773 = vand.u32 2147483647, %v1311
          %v1774 = vand.u32 2147483647, %v1314
          %v1775 = vand.u32 2147483647, %v1317
          %v1776 = vand.u32 2147483647, %v1320
          %v1777 = vand.u32 2147483647, %v1323
          %v1778 = vand.u32 2147483647, %v1326
          %v1779 = vand.u32 2147483647, %v1329
          %v1780 = vand.u32 2147483647, %v1332
          %v1781 = vsub.f32 0.0, %v1749
          %v1782 = vsub.f32 0.0, %v1750
          %v1783 = vsub.f32 0.0, %v1751
          %v1784 = vsub.f32 0.0, %v1752
          %v1785 = vsub.f32 0.0, %v1753
          %v1786 = vsub.f32 0.0, %v1754
          %v1787 = vsub.f32 0.0, %v1755
          %v1788 = vsub.f32 0.0, %v1756
          %v1789 = vsub.f32 0.0, %v1757
          %v1790 = vsub.f32 0.0, %v1758
          %v1791 = vsub.f32 0.0, %v1759
          %v1792 = vsub.f32 0.0, %v1760
          %v1793 = vsub.f32 0.0, %v1761
          %v1794 = vsub.f32 0.0, %v1762
          %v1795 = vsub.f32 0.0, %v1763
          %v1796 = vsub.f32 0.0, %v1764
          %v1797 = vsub.f32 0.0, %v1765
          %v1798 = vsub.f32 0.0, %v1766
          %v1799 = vsub.f32 0.0, %v1767
          %v1800 = vsub.f32 0.0, %v1768
          %v1801 = vsub.f32 0.0, %v1769
          %v1802 = vsub.f32 0.0, %v1770
          %v1803 = vsub.f32 0.0, %v1771
          %v1804 = vsub.f32 0.0, %v1772
          %v1805 = vsub.f32 0.0, %v1773
          %v1806 = vsub.f32 0.0, %v1774
          %v1807 = vsub.f32 0.0, %v1775
          %v1808 = vsub.f32 0.0, %v1776
          %v1809 = vsub.f32 0.0, %v1777
          %v1810 = vsub.f32 0.0, %v1778
          %v1811 = vsub.f32 0.0, %v1779
          %v1812 = vsub.f32 0.0, %v1780
          %v1813 = vmul.f32 %v1781, 1.442695
          %v1814 = vpow.pop %v1813
          %v1815 = vmul.f32 %v1782, 1.442695
          %v1816 = vpow.pop %v1815
          %v1817 = vmul.f32 %v1783, 1.442695
          %v1818 = vpow.pop %v1817
          %v1819 = vmul.f32 %v1784, 1.442695
          %v1820 = vpow.pop %v1819
          %v1821 = vmul.f32 %v1785, 1.442695
          %v1822 = vpow.pop %v1821
          %v1823 = vmul.f32 %v1786, 1.442695
          %v1824 = vpow.pop %v1823
          %v1825 = vmul.f32 %v1787, 1.442695
          %v1826 = vpow.pop %v1825
          %v1827 = vmul.f32 %v1788, 1.442695
          %v1828 = vpow.pop %v1827
          %v1829 = vmul.f32 %v1789, 1.442695
          %v1830 = vpow.pop %v1829
          %v1831 = vmul.f32 %v1790, 1.442695
          %v1832 = vpow.pop %v1831
          %v1833 = vmul.f32 %v1791, 1.442695
          %v1834 = vpow.pop %v1833
          %v1835 = vmul.f32 %v1792, 1.442695
          %v1836 = vpow.pop %v1835
          %v1837 = vmul.f32 %v1793, 1.442695
          %v1838 = vpow.pop %v1837
          %v1839 = vmul.f32 %v1794, 1.442695
          %v1840 = vpow.pop %v1839
          %v1841 = vmul.f32 %v1795, 1.442695
          %v1842 = vpow.pop %v1841
          %v1843 = vmul.f32 %v1796, 1.442695
          %v1844 = vpow.pop %v1843
          %v1845 = vmul.f32 %v1797, 1.442695
          %v1846 = vpow.pop %v1845
          %v1847 = vmul.f32 %v1798, 1.442695
          %v1848 = vpow.pop %v1847
          %v1849 = vmul.f32 %v1799, 1.442695
          %v1850 = vpow.pop %v1849
          %v1851 = vmul.f32 %v1800, 1.442695
          %v1852 = vpow.pop %v1851
          %v1853 = vmul.f32 %v1801, 1.442695
          %v1854 = vpow.pop %v1853
          %v1855 = vmul.f32 %v1802, 1.442695
          %v1856 = vpow.pop %v1855
          %v1857 = vmul.f32 %v1803, 1.442695
          %v1858 = vpow.pop %v1857
          %v1859 = vmul.f32 %v1804, 1.442695
          %v1860 = vpow.pop %v1859
          %v1861 = vmul.f32 %v1805, 1.442695
          %v1862 = vpow.pop %v1861
          %v1863 = vmul.f32 %v1806, 1.442695
          %v1864 = vpow.pop %v1863
          %v1865 = vmul.f32 %v1807, 1.442695
          %v1866 = vpow.pop %v1865
          %v1867 = vmul.f32 %v1808, 1.442695
          %v1868 = vpow.pop %v1867
          %v1869 = vmul.f32 %v1809, 1.442695
          %v1870 = vpow.pop %v1869
          %v1871 = vmul.f32 %v1810, 1.442695
          %v1872 = vpow.pop %v1871
          %v1873 = vmul.f32 %v1811, 1.442695
          %v1874 = vpow.pop %v1873
          %v1875 = vmul.f32 %v1812, 1.442695
          %v1876 = vpow.pop %v1875
          %v1877 = vadd.f32 %v1814, 1.0
          %v1878 = vadd.f32 %v1816, 1.0
          %v1879 = vadd.f32 %v1818, 1.0
          %v1880 = vadd.f32 %v1820, 1.0
          %v1881 = vadd.f32 %v1822, 1.0
          %v1882 = vadd.f32 %v1824, 1.0
          %v1883 = vadd.f32 %v1826, 1.0
          %v1884 = vadd.f32 %v1828, 1.0
          %v1885 = vadd.f32 %v1830, 1.0
          %v1886 = vadd.f32 %v1832, 1.0
          %v1887 = vadd.f32 %v1834, 1.0
          %v1888 = vadd.f32 %v1836, 1.0
          %v1889 = vadd.f32 %v1838, 1.0
          %v1890 = vadd.f32 %v1840, 1.0
          %v1891 = vadd.f32 %v1842, 1.0
          %v1892 = vadd.f32 %v1844, 1.0
          %v1893 = vadd.f32 %v1846, 1.0
          %v1894 = vadd.f32 %v1848, 1.0
          %v1895 = vadd.f32 %v1850, 1.0
          %v1896 = vadd.f32 %v1852, 1.0
          %v1897 = vadd.f32 %v1854, 1.0
          %v1898 = vadd.f32 %v1856, 1.0
          %v1899 = vadd.f32 %v1858, 1.0
          %v1900 = vadd.f32 %v1860, 1.0
          %v1901 = vadd.f32 %v1862, 1.0
          %v1902 = vadd.f32 %v1864, 1.0
          %v1903 = vadd.f32 %v1866, 1.0
          %v1904 = vadd.f32 %v1868, 1.0
          %v1905 = vadd.f32 %v1870, 1.0
          %v1906 = vadd.f32 %v1872, 1.0
          %v1907 = vadd.f32 %v1874, 1.0
          %v1908 = vadd.f32 %v1876, 1.0
          %v1909 = vlog2.pop %v1877
          %v1910 = vmul.f32 %v1909, 0.6931472
          %v1911 = vlog2.pop %v1878
          %v1912 = vmul.f32 %v1911, 0.6931472
          %v1913 = vlog2.pop %v1879
          %v1914 = vmul.f32 %v1913, 0.6931472
          %v1915 = vlog2.pop %v1880
          %v1916 = vmul.f32 %v1915, 0.6931472
          %v1917 = vlog2.pop %v1881
          %v1918 = vmul.f32 %v1917, 0.6931472
          %v1919 = vlog2.pop %v1882
          %v1920 = vmul.f32 %v1919, 0.6931472
          %v1921 = vlog2.pop %v1883
          %v1922 = vmul.f32 %v1921, 0.6931472
          %v1923 = vlog2.pop %v1884
          %v1924 = vmul.f32 %v1923, 0.6931472
          %v1925 = vlog2.pop %v1885
          %v1926 = vmul.f32 %v1925, 0.6931472
          %v1927 = vlog2.pop %v1886
          %v1928 = vmul.f32 %v1927, 0.6931472
          %v1929 = vlog2.pop %v1887
          %v1930 = vmul.f32 %v1929, 0.6931472
          %v1931 = vlog2.pop %v1888
          %v1932 = vmul.f32 %v1931, 0.6931472
          %v1933 = vlog2.pop %v1889
          %v1934 = vmul.f32 %v1933, 0.6931472
          %v1935 = vlog2.pop %v1890
          %v1936 = vmul.f32 %v1935, 0.6931472
          %v1937 = vlog2.pop %v1891
          %v1938 = vmul.f32 %v1937, 0.6931472
          %v1939 = vlog2.pop %v1892
          %v1940 = vmul.f32 %v1939, 0.6931472
          %v1941 = vlog2.pop %v1893
          %v1942 = vmul.f32 %v1941, 0.6931472
          %v1943 = vlog2.pop %v1894
          %v1944 = vmul.f32 %v1943, 0.6931472
          %v1945 = vlog2.pop %v1895
          %v1946 = vmul.f32 %v1945, 0.6931472
          %v1947 = vlog2.pop %v1896
          %v1948 = vmul.f32 %v1947, 0.6931472
          %v1949 = vlog2.pop %v1897
          %v1950 = vmul.f32 %v1949, 0.6931472
          %v1951 = vlog2.pop %v1898
          %v1952 = vmul.f32 %v1951, 0.6931472
          %v1953 = vlog2.pop %v1899
          %v1954 = vmul.f32 %v1953, 0.6931472
          %v1955 = vlog2.pop %v1900
          %v1956 = vmul.f32 %v1955, 0.6931472
          %v1957 = vlog2.pop %v1901
          %v1958 = vmul.f32 %v1957, 0.6931472
          %v1959 = vlog2.pop %v1902
          %v1960 = vmul.f32 %v1959, 0.6931472
          %v1961 = vlog2.pop %v1903
          %v1962 = vmul.f32 %v1961, 0.6931472
          %v1963 = vlog2.pop %v1904
          %v1964 = vmul.f32 %v1963, 0.6931472
          %v1965 = vlog2.pop %v1905
          %v1966 = vmul.f32 %v1965, 0.6931472
          %v1967 = vlog2.pop %v1906
          %v1968 = vmul.f32 %v1967, 0.6931472
          %v1969 = vlog2.pop %v1907
          %v1970 = vmul.f32 %v1969, 0.6931472
          %v1971 = vlog2.pop %v1908
          %v1972 = vmul.f32 %v1971, 0.6931472
          %v1973 = vadd.f32 %v1717, %v1910
          %v1974 = vadd.f32 %v1718, %v1912
          %v1975 = vadd.f32 %v1719, %v1914
          %v1976 = vadd.f32 %v1720, %v1916
          %v1977 = vadd.f32 %v1721, %v1918
          %v1978 = vadd.f32 %v1722, %v1920
          %v1979 = vadd.f32 %v1723, %v1922
          %v1980 = vadd.f32 %v1724, %v1924
          %v1981 = vadd.f32 %v1725, %v1926
          %v1982 = vadd.f32 %v1726, %v1928
          %v1983 = vadd.f32 %v1727, %v1930
          %v1984 = vadd.f32 %v1728, %v1932
          %v1985 = vadd.f32 %v1729, %v1934
          %v1986 = vadd.f32 %v1730, %v1936
          %v1987 = vadd.f32 %v1731, %v1938
          %v1988 = vadd.f32 %v1732, %v1940
          %v1989 = vadd.f32 %v1733, %v1942
          %v1990 = vadd.f32 %v1734, %v1944
          %v1991 = vadd.f32 %v1735, %v1946
          %v1992 = vadd.f32 %v1736, %v1948
          %v1993 = vadd.f32 %v1737, %v1950
          %v1994 = vadd.f32 %v1738, %v1952
          %v1995 = vadd.f32 %v1739, %v1954
          %v1996 = vadd.f32 %v1740, %v1956
          %v1997 = vadd.f32 %v1741, %v1958
          %v1998 = vadd.f32 %v1742, %v1960
          %v1999 = vadd.f32 %v1743, %v1962
          %v2000 = vadd.f32 %v1744, %v1964
          %v2001 = vadd.f32 %v1745, %v1966
          %v2002 = vadd.f32 %v1746, %v1968
          %v2003 = vadd.f32 %v1747, %v1970
          %v2004 = vadd.f32 %v1748, %v1972
          %v2005 = vmax.f32 %v1973, 2.0
          %v2006 = vmax.f32 %v1974, 2.0
          %v2007 = vmax.f32 %v1975, 2.0
          %v2008 = vmax.f32 %v1976, 2.0
          %v2009 = vmax.f32 %v1977, 2.0
          %v2010 = vmax.f32 %v1978, 2.0
          %v2011 = vmax.f32 %v1979, 2.0
          %v2012 = vmax.f32 %v1980, 2.0
          %v2013 = vmax.f32 %v1981, 2.0
          %v2014 = vmax.f32 %v1982, 2.0
          %v2015 = vmax.f32 %v1983, 2.0
          %v2016 = vmax.f32 %v1984, 2.0
          %v2017 = vmax.f32 %v1985, 2.0
          %v2018 = vmax.f32 %v1986, 2.0
          %v2019 = vmax.f32 %v1987, 2.0
          %v2020 = vmax.f32 %v1988, 2.0
          %v2021 = vmax.f32 %v1989, 2.0
          %v2022 = vmax.f32 %v1990, 2.0
          %v2023 = vmax.f32 %v1991, 2.0
          %v2024 = vmax.f32 %v1992, 2.0
          %v2025 = vmax.f32 %v1993, 2.0
          %v2026 = vmax.f32 %v1994, 2.0
          %v2027 = vmax.f32 %v1995, 2.0
          %v2028 = vmax.f32 %v1996, 2.0
          %v2029 = vmax.f32 %v1997, 2.0
          %v2030 = vmax.f32 %v1998, 2.0
          %v2031 = vmax.f32 %v1999, 2.0
          %v2032 = vmax.f32 %v2000, 2.0
          %v2033 = vmax.f32 %v2001, 2.0
          %v2034 = vmax.f32 %v2002, 2.0
          %v2035 = vmax.f32 %v2003, 2.0
          %v2036 = vmax.f32 %v2004, 2.0
          %2037 = vst [vmem:[%s317] sm:$0xff] %v2005
          %2038 = vst [vmem:[%s317 + $0x8] sm:$0xff] %v2006
          %2039 = vst [vmem:[%s317 + $0x10] sm:$0xff] %v2007
          %2040 = vst [vmem:[%s317 + $0x18] sm:$0xff] %v2008
          %2041 = vst [vmem:[%s317 + $0x20] sm:$0xff] %v2009
          %2042 = vst [vmem:[%s317 + $0x28] sm:$0xff] %v2010
          %2043 = vst [vmem:[%s317 + $0x30] sm:$0xff] %v2011
          %2044 = vst [vmem:[%s317 + $0x38] sm:$0xff] %v2012
          %2045 = vst [vmem:[%s317 + $0x40] sm:$0xff] %v2013
          %2046 = vst [vmem:[%s317 + $0x48] sm:$0xff] %v2014
          %2047 = vst [vmem:[%s317 + $0x50] sm:$0xff] %v2015
          %2048 = vst [vmem:[%s317 + $0x58] sm:$0xff] %v2016
          %2049 = vst [vmem:[%s317 + $0x60] sm:$0xff] %v2017
          %2050 = vst [vmem:[%s317 + $0x68] sm:$0xff] %v2018
          %2051 = vst [vmem:[%s317 + $0x70] sm:$0xff] %v2019
          %2052 = vst [vmem:[%s317 + $0x78] sm:$0xff] %v2020
          %2053 = vst [vmem:[%s317 + $0x80] sm:$0xff] %v2021
          %2054 = vst [vmem:[%s317 + $0x88] sm:$0xff] %v2022
          %2055 = vst [vmem:[%s317 + $0x90] sm:$0xff] %v2023
          %2056 = vst [vmem:[%s317 + $0x98] sm:$0xff] %v2024
          %2057 = vst [vmem:[%s317 + $0xa0] sm:$0xff] %v2025
          %2058 = vst [vmem:[%s317 + $0xa8] sm:$0xff] %v2026
          %2059 = vst [vmem:[%s317 + $0xb0] sm:$0xff] %v2027
          %2060 = vst [vmem:[%s317 + $0xb8] sm:$0xff] %v2028
          %2061 = vst [vmem:[%s317 + $0xc0] sm:$0xff] %v2029
          %2062 = vst [vmem:[%s317 + $0xc8] sm:$0xff] %v2030
          %2063 = vst [vmem:[%s317 + $0xd0] sm:$0xff] %v2031
          %2064 = vst [vmem:[%s317 + $0xd8] sm:$0xff] %v2032
          %2065 = vst [vmem:[%s317 + $0xe0] sm:$0xff] %v2033
          %2066 = vst [vmem:[%s317 + $0xe8] sm:$0xff] %v2034
          %2067 = vst [vmem:[%s317 + $0xf0] sm:$0xff] %v2035
          %2068 = vst [vmem:[%s317 + $0xf8] sm:$0xff] %v2036
        $region52: #{tpu_custom_call.1} parent=31 // pred_fallthru
          _
        %s2069 = sand.u32 %s122, 1
        %s2070 = scalar_lea.sflag [#allocation5], %s2069
        %s2071 = sand.u32 %s122, 1
        %s2072 = smul.addr %s2071, 256
        %s2073 = scalar_lea.vmem [#allocation9], %s2072
        %s2074 = sand.u32 %s27, 1
        %s2075 = scalar_lea.sflag [#allocation11], %s2074
        %s2076 = sand.u32 %s148, 1
        %s2077 = smul.addr %s2076, 256
        %s2078 = scalar_lea.vmem [#allocation10], %s2077
        %s2079 = sand.u32 %s27, 1
        %s2080 = scalar_lea.sflag [#allocation11], %s2079
        %s2081 = sand.u32 %s174, 1
        %s2082 = smul.addr %s2081, 256
        %s2083 = scalar_lea.vmem [#allocation12], %s2082
        // Predicated region
        $region53: #{tpu_custom_call.1} parent=31 // pred_check
          %p2084 = pneg %p132
        $region54: #{tpu_custom_call.1} parent=31 // pred_check_branch
          %2086 = sbr.rel (%p2084) target = $region56
        $region55: #{tpu_custom_call.1} parent=31 // pred_region
          %s2087 = smul.u32 32, %s31
          %2089 = vsyncadd %s2070, 0
          %s2090 = smul.addr %s2087, 8
          %s2091 = scalar_lea.hbm %s3, %s2090
          %s2092 = sshll.u32 %s2073, 4
          %s2093 = int_to_ptr.vmem [resolvable:$true] %s2092
          %s2094 = sshll.u32 %s2091, 4
          %s2095 = int_to_ptr.hbm [resolvable:$true] %s2094
          %2100 = dma.vmem_to_hbm [thread:$0]  %s2093, 4096, %s2095, %s2070, 128, 128, 8
        $region56: #{tpu_custom_call.1} parent=31 // pred_fallthru
          _
        // Predicated region
        $region57: #{tpu_custom_call.1} parent=31 // pred_check
          %p2101 = pneg %p158
        $region58: #{tpu_custom_call.1} parent=31 // pred_check_branch
          %2103 = sbr.rel (%p2101) target = $region60
        $region59: #{tpu_custom_call.1} parent=31 // pred_region
          %s2104 = smul.u32 32, %s31
          %2106 = vsyncadd %s2075, 0
          %s2107 = smul.addr %s2104, 8
          %s2108 = scalar_lea.hbm %s4, %s2107
          %s2109 = sshll.u32 %s2078, 4
          %s2110 = int_to_ptr.vmem [resolvable:$true] %s2109
          %s2111 = sshll.u32 %s2108, 4
          %s2112 = int_to_ptr.hbm [resolvable:$true] %s2111
          %2117 = dma.vmem_to_hbm [thread:$0]  %s2110, 4096, %s2112, %s2075, 128, 128, 8
        $region60: #{tpu_custom_call.1} parent=31 // pred_fallthru
          _
        // Predicated region
        $region61: #{tpu_custom_call.1} parent=31 // pred_check
          %p2118 = pneg %p184
        $region62: #{tpu_custom_call.1} parent=31 // pred_check_branch
          %2120 = sbr.rel (%p2118) target = $region64
        $region63: #{tpu_custom_call.1} parent=31 // pred_region
          %s2121 = smul.u32 32, %s31
          %2123 = vsyncadd %s2080, 0
          %s2124 = smul.addr %s2121, 8
          %s2125 = scalar_lea.hbm %s5, %s2124
          %s2126 = sshll.u32 %s2083, 4
          %s2127 = int_to_ptr.vmem [resolvable:$true] %s2126
          %s2128 = sshll.u32 %s2125, 4
          %s2129 = int_to_ptr.hbm [resolvable:$true] %s2128
          %2134 = dma.vmem_to_hbm [thread:$0]  %s2127, 4096, %s2129, %s2080, 128, 128, 8
        $region64: #{tpu_custom_call.1} parent=31 // pred_fallthru
          _
      $region32: #{tpu_custom_call.1} parent=5 // pred_fallthru
        _
      %p2135 = scmp.le.s32.totalorder 2, %s22
      // Predicated region
      $region65: #{tpu_custom_call.1} parent=5 // pred_check
        %p2136 = pneg %p2135
      $region66: #{tpu_custom_call.1} parent=5 // pred_check_branch
        %2138 = sbr.rel (%p2136) target = $region68
      $region67: #{tpu_custom_call.1} parent=5 // pred_region
        %s2139 = ssub.s32 %s22, 2
        // Predicated region
        $region69: #{tpu_custom_call.1} parent=67 // pred_check
          %p2140 = pneg %p138
        $region70: #{tpu_custom_call.1} parent=67 // pred_check_branch
          %2142 = sbr.rel (%p2140) target = $region72
        $region71: #{tpu_custom_call.1} parent=67 // pred_region
          %s2143 = sand.u32 %s123, 1
          %s2144 = scalar_lea.sflag [#allocation5], %s2143
          %s2145 = sand.u32 %s123, 1
          %s2146 = smul.addr %s2145, 256
          %s2147 = scalar_lea.vmem [#allocation9], %s2146
          %2149 = dma.done %s2144, 4096
        $region72: #{tpu_custom_call.1} parent=67 // pred_fallthru
          _
        // Predicated region
        $region73: #{tpu_custom_call.1} parent=67 // pred_check
          %p2150 = pneg %p164
        $region74: #{tpu_custom_call.1} parent=67 // pred_check_branch
          %2152 = sbr.rel (%p2150) target = $region76
        $region75: #{tpu_custom_call.1} parent=67 // pred_region
          %s2153 = sand.u32 %s28, 1
          %s2154 = scalar_lea.sflag [#allocation11], %s2153
          %s2155 = sand.u32 %s149, 1
          %s2156 = smul.addr %s2155, 256
          %s2157 = scalar_lea.vmem [#allocation10], %s2156
          %2159 = dma.done %s2154, 4096
        $region76: #{tpu_custom_call.1} parent=67 // pred_fallthru
          _
        // Predicated region
        $region77: #{tpu_custom_call.1} parent=67 // pred_check
          %p2160 = pneg %p190
        $region78: #{tpu_custom_call.1} parent=67 // pred_check_branch
          %2162 = sbr.rel (%p2160) target = $region80
        $region79: #{tpu_custom_call.1} parent=67 // pred_region
          %s2163 = sand.u32 %s28, 1
          %s2164 = scalar_lea.sflag [#allocation11], %s2163
          %s2165 = sand.u32 %s175, 1
          %s2166 = smul.addr %s2165, 256
          %s2167 = scalar_lea.vmem [#allocation12], %s2166
          %2169 = dma.done %s2164, 4096
        $region80: #{tpu_custom_call.1} parent=67 // pred_fallthru
          _
      $region68: #{tpu_custom_call.1} parent=5 // pred_fallthru
        _
    $region6: #{tpu_custom_call.1} parent=1 // loop_footer
      %s26 = sadd.s32 1, %s22
    $region7: #{tpu_custom_call.1} parent=1 // loop_footer_branch
      %21 = sbr.rel target = $region3
    $region8: #{tpu_custom_call.1} parent=1 // loop_exit
      _
    %2170 = vsyncpa [#allocation4], 1
    %s2171 = scalar_lea.sflag [#allocation4], 1
    %2172 = vsyncpa %s2171, 1
    %2173 = vsyncpa [#allocation7], 1
    %2174 = vsyncpa [#allocation5], 1
    %s2175 = scalar_lea.sflag [#allocation5], 1
    %2176 = vsyncpa %s2175, 1
    %2177 = vsyncpa [#allocation11], 1
    %s2178 = scalar_lea.sflag [#allocation11], 1
    %2179 = vsyncpa %s2178, 1

</llo_original>
